<compile_context>
chip_gen: v7x
topology: tpu7x:2x2x1
jax: 0.10.0
libtpu: 0.0.40
codegen_flags: <defaults>
</compile_context>

<pallas_src>
import jax
import jax.numpy as jnp
from jax import lax
from jax.experimental import pallas as pl
from jax.experimental.pallas import tpu as pltpu

N = 16      # num nodes (== mamba sequence length)
C = 32      # channels
E = 64      # mamba inner dim
S = 8       # mamba SSM state dim
K = 4       # mamba depthwise conv kernel size
BN_EPS = 1e-5

# ---- parameter-slab layout: one (SLAB_ROWS, SLAB_LANES) f32 array, one DMA ----
SLAB_LANES = 2 * E + C          # 160 lanes: [Win | Wc] fits exactly
R_WXF   = 0                     # rows   0: 32  [Win | Wc]            (32, 160)
R_WDT   = 32                    # rows  32: 96  Wdt                   (64,  64)
R_WOUT  = 96                    # rows  96:160  Wout                  (64,  32)
R_WBCT  = 160                   # rows 160:176  [WB^T ; WC^T]         (16,  64)
R_AT    = 176                   # rows 176:184  A_log^T               ( 8,  64)
R_WCONV = 184                   # rows 184:188  depthwise conv taps   ( 4,  64)
R_BC    = 192                   # one bias vector per row, lane 0-based
R_GAMMA = 193
R_BETA  = 194
R_BOUT  = 195
R_BIN   = 196
R_BCONV = 197
R_BDT   = 198
R_D     = 199
SLAB_ROWS = 200


def apply_conv_kernel(data_ref, p_ref, out_ref):
    x = data_ref[0:N, :]                                        # (N, C)
    adj = data_ref[N:2 * N, 0:N]                                 # (N, N)

    # Fused x-projection: one MXU pass yields both x@Wc (graph conv transform)
    # and x@Win (mamba in-projection); both slices are 128-lane aligned.
    xw = jnp.dot(x, p_ref[R_WXF:R_WXF + C, :],
                 preferred_element_type=jnp.float32)             # (N, 2E+C)
    proj = xw[:, 0:2 * E] + p_ref[R_BIN:R_BIN + 1, 0:2 * E]      # (N, 2E)
    xwc = xw[:, 2 * E:2 * E + C]                                 # (N, C)

    # ---------- branch 1: conv + (dropout=id) + residual + batch norm ----------
    h = jnp.dot(adj, xwc, preferred_element_type=jnp.float32) \
        + p_ref[R_BC:R_BC + 1, 0:C] + x
    mean = jnp.mean(h, axis=0, keepdims=True)
    var = jnp.mean((h - mean) ** 2, axis=0, keepdims=True)
    h1 = (h - mean) * lax.rsqrt(var + BN_EPS) * p_ref[R_GAMMA:R_GAMMA + 1, 0:C] \
         + p_ref[R_BETA:R_BETA + 1, 0:C]

    # ---------- branch 2: mamba over the node sequence --------------------------
    u = proj[:, 0:E]                                             # (N, E)
    gate = proj[:, E:2 * E]                                      # (N, E)

    # Depthwise causal conv1d: tap k hits u[t-(K-1-k)], zero for t < shift.
    # Causal sublane shifts (zero-fill + slice) — no MXU, stays exact f32.
    taps = p_ref[R_WCONV:R_WCONV + K, 0:E]                       # (K, E)
    ucv = u * taps[K - 1:K, :]                                   # shift 0 tap
    for s in range(1, K):
        shifted = jnp.concatenate(
            [jnp.zeros((s, E), jnp.float32), u[:N - s, :]], axis=0)  # u[t-s]
        ucv = ucv + shifted * taps[K - 1 - s:K - s, :]
    ucv = jax.nn.silu(ucv + p_ref[R_BCONV:R_BCONV + 1, 0:E])     # (N, E)

    # Selective-SSM parameter projections (2 MXU issues, opposite orientations).
    dt = jax.nn.softplus(
        jnp.dot(ucv, p_ref[R_WDT:R_WDT + E, 0:E],
                preferred_element_type=jnp.float32)
        + p_ref[R_BDT:R_BDT + 1, 0:E])                           # (N, E)
    bct = lax.dot_general(p_ref[R_WBCT:R_WBCT + 2 * S, 0:E], ucv,
                          (((1,), (1,)), ((), ())),
                          preferred_element_type=jnp.float32)    # (2S, N)
    bsel_t = bct[0:S, :]                                         # (S, N)
    csel_t = bct[S:2 * S, :]                                     # (S, N)

    at = -jnp.exp(p_ref[R_AT:R_AT + S, 0:E])                     # (S, E) = A^T
    dtu = dt * ucv                                               # (N, E)
    row_ids = lax.broadcasted_iota(jnp.int32, (N, 1), 0)         # (N, 1)

    # Unrolled selective scan; state vreg-resident in (S, E).  decay_t / inp_t
    # are state-independent so the scheduler can hoist them off the serial
    # chain; y is gathered with one-hot row masks (no concat tail).
    state = jnp.zeros((S, E), jnp.float32)
    y = jnp.zeros((N, E), jnp.float32)
    for t in range(N):
        decay_t = jnp.exp(dt[t:t + 1, :] * at)                   # (S, E)
        inp_t = bsel_t[:, t:t + 1] * dtu[t:t + 1, :]             # (S, E)
        state = decay_t * state + inp_t
        y_t = jnp.sum(state * csel_t[:, t:t + 1], axis=0, keepdims=True)  # (1, E)
        y = y + (row_ids == t).astype(jnp.float32) * y_t
    y = (y + p_ref[R_D:R_D + 1, 0:E] * ucv) * jax.nn.silu(gate)
    h2 = jnp.dot(y, p_ref[R_WOUT:R_WOUT + E, 0:C],
                 preferred_element_type=jnp.float32) + p_ref[R_BOUT:R_BOUT + 1, 0:C]

    # out = sum(hs) = norm1(conv(x)+x) + mamba(x[None]).mean(0)
    out_ref[...] = h1 + h2


# ----------------------------- wrapper glue ----------------------------------

def _row_block(a, lanes=SLAB_LANES):
    a = jnp.asarray(a, jnp.float32)
    return jnp.pad(a, ((0, 0), (0, lanes - a.shape[1])))


def pack_params(params):
    """One-time parameter packing (would be done at model init in practice)."""
    (wc, bc, gamma, beta, win, bin_, wconv, bconv,
     wdt, bdt, wB, wC, alog, dpar, wout, bout) = params
    blocks = [
        _row_block(jnp.concatenate([win, wc], axis=1)),                 # R_WXF
        _row_block(wdt),                                                # R_WDT
        _row_block(wout),                                               # R_WOUT
        _row_block(jnp.concatenate([wB.T, wC.T], axis=0)),              # R_WBCT
        _row_block(alog.T),                                             # R_AT
        _row_block(jnp.concatenate(
            [wconv, jnp.zeros((8 - K, E), jnp.float32)], axis=0)),      # R_WCONV (+pad)
        _row_block(bc), _row_block(gamma), _row_block(beta), _row_block(bout),
        _row_block(bin_), _row_block(bconv), _row_block(bdt), _row_block(dpar),
    ]
    slab = jnp.concatenate(blocks, axis=0)
    assert slab.shape == (SLAB_ROWS, SLAB_LANES)
    return slab


def pack_data(x, adj):
    # Stack x over an adjacency padded to C lanes (requires N <= C, 16 <= 32).
    return jnp.concatenate(
        [x, jnp.pad(adj, ((0, 0), (0, C - N)))], axis=0)                # (2N, C)


def apply_conv(x, adj, params):
    data = pack_data(x, adj)
    slab = pack_params(params)
    return pl.pallas_call(
        apply_conv_kernel,
        out_shape=jax.ShapeDtypeStruct((N, C), jnp.float32),
        in_specs=[pl.BlockSpec(memory_space=pltpu.MemorySpace.VMEM),
                  pl.BlockSpec(memory_space=pltpu.MemorySpace.VMEM)],
        out_specs=pl.BlockSpec(memory_space=pltpu.MemorySpace.VMEM),
    )(data, slab)


# ----------------------------- pure-JAX reference ----------------------------

def apply_conv_reference(x, adj, params):
    """Pure-JAX reference with identical semantics (for correctness check)."""
    (wc, bc, gamma, beta, win, bin_, wconv, bconv,
     wdt, bdt, wB, wC, alog, dpar, wout, bout) = params
    hp = lax.Precision.HIGHEST
    dot = lambda a, b: jnp.dot(a, b, precision=hp)

    # GCNConv: transform then propagate.
    h = dot(adj, dot(x, wc)) + bc
    h = h + x                                        # dropout(p=0.0) == identity
    mean = h.mean(axis=0, keepdims=True)
    var = ((h - mean) ** 2).mean(axis=0, keepdims=True)
    h1 = (h - mean) / jnp.sqrt(var + BN_EPS) * gamma + beta

    proj = dot(x, win) + bin_
    u, gate = proj[:, :E], proj[:, E:]
    u_pad = jnp.concatenate([jnp.zeros((K - 1, E), jnp.float32), u], axis=0)
    ucv = jnp.zeros((N, E), jnp.float32)
    for k in range(K):
        ucv = ucv + u_pad[k:k + N, :] * wconv[k][None, :]
    ucv = jax.nn.silu(ucv + bconv)

    dt = jax.nn.softplus(dot(ucv, wdt) + bdt)
    Bsel = dot(ucv, wB)
    Csel = dot(ucv, wC)
    A = -jnp.exp(alog)                               # (E, S)

    def step(state, inp):
        u_t, dt_t, b_t, c_t = inp
        state = jnp.exp(dt_t[:, None] * A) * state + (dt_t * u_t)[:, None] * b_t[None, :]
        y_t = jnp.sum(state * c_t[None, :], axis=1) + dpar[0] * u_t
        return state, y_t

    _, ys = lax.scan(step, jnp.zeros((E, S), jnp.float32), (ucv, dt, Bsel, Csel))
    y = ys * jax.nn.silu(gate)
    h2 = dot(y, wout) + bout
    return h1 + h2


# ----------------------------- example construction --------------------------

def make_params(key):
    ks = jax.random.split(key, 16)
    n = lambda k, shape, s=0.1: (s * jax.random.normal(k, shape)).astype(jnp.float32)
    params = (
        n(ks[0], (C, C)),                       # Wc      (graph-conv weight)
        n(ks[1], (1, C)),                       # bc
        jnp.ones((1, C), jnp.float32),          # gamma   (batch-norm weight)
        jnp.zeros((1, C), jnp.float32),         # beta    (batch-norm bias)
        n(ks[2], (C, 2 * E)),                   # Win     (mamba in-proj)
        n(ks[3], (1, 2 * E)),                   # bin
        n(ks[4], (K, E)),                       # wconv   (depthwise conv, taps x channels)
        n(ks[5], (1, E)),                       # bconv
        n(ks[6], (E, E)),                       # Wdt
        n(ks[7], (1, E)),                       # bdt
        n(ks[8], (E, S)),                       # WB
        n(ks[9], (E, S)),                       # WC
        jnp.log(jnp.broadcast_to(
            jnp.arange(1, S + 1, dtype=jnp.float32)[None, :], (E, S))),  # A_log
        jnp.ones((1, E), jnp.float32),          # D
        n(ks[10], (E, C)),                      # Wout    (mamba out-proj)
        n(ks[11], (1, C)),                      # bout
    )
    return params


def make_gcn_adjacency(num_nodes):
    # ring graph edge_index -> dense GCN-normalized adjacency D^-1/2 (A+I) D^-1/2
    src = jnp.arange(num_nodes)
    dst = (src + 1) % num_nodes
    adj = jnp.zeros((num_nodes, num_nodes), jnp.float32)
    adj = adj.at[src, dst].set(1.0)
    adj = adj.at[dst, src].set(1.0)
    adj = adj + jnp.eye(num_nodes, dtype=jnp.float32)
    deg = adj.sum(axis=1)
    dinv = 1.0 / jnp.sqrt(deg)
    return adj * dinv[:, None] * dinv[None, :]


if __name__ == "__main__":
    key = jax.random.PRNGKey(0)
    kx, kp = jax.random.split(key)
    x = jax.random.normal(kx, (N, C), dtype=jnp.float32)
    adj = make_gcn_adjacency(N)
    params = make_params(kp)

    out = jax.block_until_ready(apply_conv(x, adj, params))
    ref = jax.block_until_ready(apply_conv_reference(x, adj, params))

    assert out.shape == (N, C)
    assert bool(jnp.all(jnp.isfinite(out)))
    assert bool(jnp.allclose(out, ref, rtol=1e-2, atol=1e-2)), \
        float(jnp.max(jnp.abs(out - ref)))
    print("KERNEL_OK")
</pallas_src>

<mosaic_0001>
module attributes {stable_mosaic.version = 11 : i64} {
  func.func @apply_conv_kernel(%arg0: memref<32x32xf32, #tpu.memory_space<vmem>>, %arg1: memref<200x160xf32, #tpu.memory_space<vmem>>, %arg2: memref<16x32xf32, #tpu.memory_space<vmem>>) attributes {dimension_semantics = [], scalar_prefetch = 0 : i64, scratch_operands = 0 : i64, tpu.core_type = #tpu.core_type<tc>} {
    %c0 = arith.constant 0 : index
    %c0_0 = arith.constant 0 : index
    %0 = vector.load %arg0[%c0, %c0_0] : memref<32x32xf32, #tpu.memory_space<vmem>>, vector<16x32xf32>
    %c16 = arith.constant 16 : index
    %c0_1 = arith.constant 0 : index
    %1 = vector.load %arg0[%c16, %c0_1] : memref<32x32xf32, #tpu.memory_space<vmem>>, vector<16x16xf32>
    %c0_2 = arith.constant 0 : index
    %c0_3 = arith.constant 0 : index
    %2 = vector.load %arg1[%c0_2, %c0_3] : memref<200x160xf32, #tpu.memory_space<vmem>>, vector<32x160xf32>
    %cst = arith.constant dense<0.000000e+00> : vector<16x160xf32>
    %3 = tpu.matmul %0, %2, %cst {dimension_numbers = #tpu.dot_dimension_numbers<[1], [0], [0], [1], [0, 0, 1, 1], [], []>} : vector<16x32xf32>, vector<32x160xf32>, vector<16x160xf32> -> vector<16x160xf32>
    %4 = vector.extract_strided_slice %3 {offsets = [0, 0], sizes = [16, 128], strides = [1, 1]} : vector<16x160xf32> to vector<16x128xf32>
    %c196 = arith.constant 196 : index
    %c0_4 = arith.constant 0 : index
    %5 = vector.load %arg1[%c196, %c0_4] : memref<200x160xf32, #tpu.memory_space<vmem>>, vector<1x128xf32>
    %6 = vector.broadcast %5 : vector<1x128xf32> to vector<16x128xf32>
    %7 = arith.addf %4, %6 : vector<16x128xf32>
    %8 = vector.extract_strided_slice %3 {offsets = [0, 128], sizes = [16, 32], strides = [1, 1]} : vector<16x160xf32> to vector<16x32xf32>
    %cst_5 = arith.constant dense<0.000000e+00> : vector<16x32xf32>
    %9 = tpu.matmul %1, %8, %cst_5 {dimension_numbers = #tpu.dot_dimension_numbers<[1], [0], [0], [1], [0, 0, 1, 1], [], []>} : vector<16x16xf32>, vector<16x32xf32>, vector<16x32xf32> -> vector<16x32xf32>
    %c192 = arith.constant 192 : index
    %c0_6 = arith.constant 0 : index
    %10 = vector.load %arg1[%c192, %c0_6] : memref<200x160xf32, #tpu.memory_space<vmem>>, vector<1x32xf32>
    %11 = vector.broadcast %10 : vector<1x32xf32> to vector<16x32xf32>
    %12 = arith.addf %9, %11 : vector<16x32xf32>
    %13 = arith.addf %12, %0 : vector<16x32xf32>
    %cst_7 = arith.constant dense<0.000000e+00> : vector<32xf32>
    %14 = vector.multi_reduction <add>, %13, %cst_7 [0] : vector<16x32xf32> to vector<32xf32>
    %15 = vector.shape_cast %14 : vector<32xf32> to vector<1x32xf32>
    %cst_8 = arith.constant 1.600000e+01 : f32
    %16 = vector.broadcast %cst_8 : f32 to vector<1x32xf32>
    %17 = arith.divf %15, %16 : vector<1x32xf32>
    %18 = vector.broadcast %17 : vector<1x32xf32> to vector<16x32xf32>
    %19 = arith.subf %13, %18 : vector<16x32xf32>
    %20 = arith.mulf %19, %19 : vector<16x32xf32>
    %cst_9 = arith.constant dense<0.000000e+00> : vector<32xf32>
    %21 = vector.multi_reduction <add>, %20, %cst_9 [0] : vector<16x32xf32> to vector<32xf32>
    %22 = vector.shape_cast %21 : vector<32xf32> to vector<1x32xf32>
    %cst_10 = arith.constant 1.600000e+01 : f32
    %23 = vector.broadcast %cst_10 : f32 to vector<1x32xf32>
    %24 = arith.divf %22, %23 : vector<1x32xf32>
    %25 = vector.broadcast %17 : vector<1x32xf32> to vector<16x32xf32>
    %26 = arith.subf %13, %25 : vector<16x32xf32>
    %cst_11 = arith.constant 9.99999974E-6 : f32
    %27 = vector.broadcast %cst_11 : f32 to vector<1x32xf32>
    %28 = arith.addf %24, %27 : vector<1x32xf32>
    %29 = math.rsqrt %28 : vector<1x32xf32>
    %30 = vector.broadcast %29 : vector<1x32xf32> to vector<16x32xf32>
    %31 = arith.mulf %26, %30 : vector<16x32xf32>
    %c193 = arith.constant 193 : index
    %c0_12 = arith.constant 0 : index
    %32 = vector.load %arg1[%c193, %c0_12] : memref<200x160xf32, #tpu.memory_space<vmem>>, vector<1x32xf32>
    %33 = vector.broadcast %32 : vector<1x32xf32> to vector<16x32xf32>
    %34 = arith.mulf %31, %33 : vector<16x32xf32>
    %c194 = arith.constant 194 : index
    %c0_13 = arith.constant 0 : index
    %35 = vector.load %arg1[%c194, %c0_13] : memref<200x160xf32, #tpu.memory_space<vmem>>, vector<1x32xf32>
    %36 = vector.broadcast %35 : vector<1x32xf32> to vector<16x32xf32>
    %37 = arith.addf %34, %36 : vector<16x32xf32>
    %38 = vector.extract_strided_slice %7 {offsets = [0, 0], sizes = [16, 64], strides = [1, 1]} : vector<16x128xf32> to vector<16x64xf32>
    %39 = vector.extract_strided_slice %7 {offsets = [0, 64], sizes = [16, 64], strides = [1, 1]} : vector<16x128xf32> to vector<16x64xf32>
    %c184 = arith.constant 184 : index
    %c0_14 = arith.constant 0 : index
    %40 = vector.load %arg1[%c184, %c0_14] : memref<200x160xf32, #tpu.memory_space<vmem>>, vector<4x64xf32>
    %41 = vector.extract_strided_slice %40 {offsets = [3, 0], sizes = [1, 64], strides = [1, 1]} : vector<4x64xf32> to vector<1x64xf32>
    %42 = vector.broadcast %41 : vector<1x64xf32> to vector<16x64xf32>
    %43 = arith.mulf %38, %42 : vector<16x64xf32>
    %cst_15 = arith.constant 0.000000e+00 : f32
    %44 = vector.broadcast %cst_15 : f32 to vector<1x64xf32>
    %45 = vector.extract_strided_slice %38 {offsets = [0, 0], sizes = [15, 64], strides = [1, 1]} : vector<16x64xf32> to vector<15x64xf32>
    %46 = tpu.concatenate %44, %45 in 0 : vector<1x64xf32>, vector<15x64xf32> -> vector<16x64xf32>
    %47 = vector.extract_strided_slice %40 {offsets = [2, 0], sizes = [1, 64], strides = [1, 1]} : vector<4x64xf32> to vector<1x64xf32>
    %48 = vector.broadcast %47 : vector<1x64xf32> to vector<16x64xf32>
    %49 = arith.mulf %46, %48 : vector<16x64xf32>
    %50 = arith.addf %43, %49 : vector<16x64xf32>
    %cst_16 = arith.constant 0.000000e+00 : f32
    %51 = vector.broadcast %cst_16 : f32 to vector<2x64xf32>
    %52 = vector.extract_strided_slice %38 {offsets = [0, 0], sizes = [14, 64], strides = [1, 1]} : vector<16x64xf32> to vector<14x64xf32>
    %53 = tpu.concatenate %51, %52 in 0 : vector<2x64xf32>, vector<14x64xf32> -> vector<16x64xf32>
    %54 = vector.extract_strided_slice %40 {offsets = [1, 0], sizes = [1, 64], strides = [1, 1]} : vector<4x64xf32> to vector<1x64xf32>
    %55 = vector.broadcast %54 : vector<1x64xf32> to vector<16x64xf32>
    %56 = arith.mulf %53, %55 : vector<16x64xf32>
    %57 = arith.addf %50, %56 : vector<16x64xf32>
    %cst_17 = arith.constant 0.000000e+00 : f32
    %58 = vector.broadcast %cst_17 : f32 to vector<3x64xf32>
    %59 = vector.extract_strided_slice %38 {offsets = [0, 0], sizes = [13, 64], strides = [1, 1]} : vector<16x64xf32> to vector<13x64xf32>
    %60 = tpu.concatenate %58, %59 in 0 : vector<3x64xf32>, vector<13x64xf32> -> vector<16x64xf32>
    %61 = vector.extract_strided_slice %40 {offsets = [0, 0], sizes = [1, 64], strides = [1, 1]} : vector<4x64xf32> to vector<1x64xf32>
    %62 = vector.broadcast %61 : vector<1x64xf32> to vector<16x64xf32>
    %63 = arith.mulf %60, %62 : vector<16x64xf32>
    %64 = arith.addf %57, %63 : vector<16x64xf32>
    %c197 = arith.constant 197 : index
    %c0_18 = arith.constant 0 : index
    %65 = vector.load %arg1[%c197, %c0_18] : memref<200x160xf32, #tpu.memory_space<vmem>>, vector<1x64xf32>
    %66 = vector.broadcast %65 : vector<1x64xf32> to vector<16x64xf32>
    %67 = arith.addf %64, %66 : vector<16x64xf32>
    %68 = arith.negf %67 : vector<16x64xf32>
    %69 = math.exp %68 : vector<16x64xf32>
    %cst_19 = arith.constant 1.000000e+00 : f32
    %70 = vector.broadcast %cst_19 : f32 to vector<16x64xf32>
    %71 = arith.addf %70, %69 : vector<16x64xf32>
    %72 = arith.divf %70, %71 : vector<16x64xf32>
    %73 = arith.mulf %67, %72 : vector<16x64xf32>
    %c32 = arith.constant 32 : index
    %c0_20 = arith.constant 0 : index
    %74 = vector.load %arg1[%c32, %c0_20] : memref<200x160xf32, #tpu.memory_space<vmem>>, vector<64x64xf32>
    %cst_21 = arith.constant dense<0.000000e+00> : vector<16x64xf32>
    %75 = tpu.matmul %73, %74, %cst_21 {dimension_numbers = #tpu.dot_dimension_numbers<[1], [0], [0], [1], [0, 0, 1, 1], [], []>} : vector<16x64xf32>, vector<64x64xf32>, vector<16x64xf32> -> vector<16x64xf32>
    %c198 = arith.constant 198 : index
    %c0_22 = arith.constant 0 : index
    %76 = vector.load %arg1[%c198, %c0_22] : memref<200x160xf32, #tpu.memory_space<vmem>>, vector<1x64xf32>
    %77 = vector.broadcast %76 : vector<1x64xf32> to vector<16x64xf32>
    %78 = arith.addf %75, %77 : vector<16x64xf32>
    %cst_23 = arith.constant 0.000000e+00 : f32
    %79 = vector.broadcast %cst_23 : f32 to vector<16x64xf32>
    %80 = arith.maximumf %78, %79 : vector<16x64xf32>
    %81 = vector.broadcast %cst_23 : f32 to vector<16x64xf32>
    %82 = arith.subf %78, %81 : vector<16x64xf32>
    %83 = arith.cmpf one, %82, %82 : vector<16x64xf32>
    %84 = vector.broadcast %cst_23 : f32 to vector<16x64xf32>
    %85 = arith.addf %78, %84 : vector<16x64xf32>
    %86 = math.absf %82 : vector<16x64xf32>
    %cst_24 = arith.constant 0.000000e+00 : f32
    %87 = vector.broadcast %cst_24 : f32 to vector<16x64xf32>
    %88 = arith.subf %87, %86 : vector<16x64xf32>
    %89 = math.exp %88 : vector<16x64xf32>
    %90 = math.log1p %89 : vector<16x64xf32>
    %91 = arith.addf %80, %90 : vector<16x64xf32>
    %92 = arith.select %83, %85, %91 : vector<16x64xi1>, vector<16x64xf32>
    %c160 = arith.constant 160 : index
    %c0_25 = arith.constant 0 : index
    %93 = vector.load %arg1[%c160, %c0_25] : memref<200x160xf32, #tpu.memory_space<vmem>>, vector<16x64xf32>
    %cst_26 = arith.constant dense<0.000000e+00> : vector<16x16xf32>
    %94 = tpu.matmul %93, %73, %cst_26 {dimension_numbers = #tpu.dot_dimension_numbers<[1], [1], [0], [0], [0, 0, 1, 0], [], []>} : vector<16x64xf32>, vector<16x64xf32>, vector<16x16xf32> -> vector<16x16xf32>
    %95 = vector.extract_strided_slice %94 {offsets = [0, 0], sizes = [8, 16], strides = [1, 1]} : vector<16x16xf32> to vector<8x16xf32>
    %96 = vector.extract_strided_slice %94 {offsets = [8, 0], sizes = [8, 16], strides = [1, 1]} : vector<16x16xf32> to vector<8x16xf32>
    %c176 = arith.constant 176 : index
    %c0_27 = arith.constant 0 : index
    %97 = vector.load %arg1[%c176, %c0_27] : memref<200x160xf32, #tpu.memory_space<vmem>>, vector<8x64xf32>
    %98 = math.exp %97 : vector<8x64xf32>
    %cst_28 = arith.constant 0.000000e+00 : f32
    %99 = vector.broadcast %cst_28 : f32 to vector<8x64xf32>
    %100 = arith.subf %99, %98 : vector<8x64xf32>
    %101 = arith.mulf %92, %73 : vector<16x64xf32>
    %102 = tpu.iota {dimensions = array<i32: 0>} : vector<16x1xi32>
    %cst_29 = arith.constant 0.000000e+00 : f32
    %103 = vector.broadcast %cst_29 : f32 to vector<8x64xf32>
    %cst_30 = arith.constant 0.000000e+00 : f32
    %104 = vector.broadcast %cst_30 : f32 to vector<16x64xf32>
    %105 = vector.extract_strided_slice %92 {offsets = [0, 0], sizes = [1, 64], strides = [1, 1]} : vector<16x64xf32> to vector<1x64xf32>
    %106 = vector.broadcast %105 : vector<1x64xf32> to vector<8x64xf32>
    %107 = arith.mulf %106, %100 : vector<8x64xf32>
    %108 = math.exp %107 : vector<8x64xf32>
    %109 = vector.extract_strided_slice %95 {offsets = [0, 0], sizes = [8, 1], strides = [1, 1]} : vector<8x16xf32> to vector<8x1xf32>
    %110 = vector.extract_strided_slice %101 {offsets = [0, 0], sizes = [1, 64], strides = [1, 1]} : vector<16x64xf32> to vector<1x64xf32>
    %111 = vector.broadcast %109 : vector<8x1xf32> to vector<8x64xf32>
    %112 = vector.broadcast %110 : vector<1x64xf32> to vector<8x64xf32>
    %113 = arith.mulf %111, %112 : vector<8x64xf32>
    %114 = arith.mulf %108, %103 : vector<8x64xf32>
    %115 = arith.addf %114, %113 : vector<8x64xf32>
    %116 = vector.extract_strided_slice %96 {offsets = [0, 0], sizes = [8, 1], strides = [1, 1]} : vector<8x16xf32> to vector<8x1xf32>
    %117 = vector.broadcast %116 : vector<8x1xf32> to vector<8x64xf32>
    %118 = arith.mulf %115, %117 : vector<8x64xf32>
    %cst_31 = arith.constant dense<0.000000e+00> : vector<64xf32>
    %119 = vector.multi_reduction <add>, %118, %cst_31 [0] : vector<8x64xf32> to vector<64xf32>
    %120 = vector.shape_cast %119 : vector<64xf32> to vector<1x64xf32>
    %c0_i32 = arith.constant 0 : i32
    %121 = vector.broadcast %c0_i32 : i32 to vector<16x1xi32>
    %122 = arith.cmpi eq, %102, %121 : vector<16x1xi32>
    %123 = arith.extui %122 : vector<16x1xi1> to vector<16x1xi32>
    %124 = arith.sitofp %123 : vector<16x1xi32> to vector<16x1xf32>
    %125 = vector.broadcast %124 : vector<16x1xf32> to vector<16x64xf32>
    %126 = vector.broadcast %120 : vector<1x64xf32> to vector<16x64xf32>
    %127 = arith.mulf %125, %126 : vector<16x64xf32>
    %128 = arith.addf %104, %127 : vector<16x64xf32>
    %129 = vector.extract_strided_slice %92 {offsets = [1, 0], sizes = [1, 64], strides = [1, 1]} : vector<16x64xf32> to vector<1x64xf32>
    %130 = vector.broadcast %129 : vector<1x64xf32> to vector<8x64xf32>
    %131 = arith.mulf %130, %100 : vector<8x64xf32>
    %132 = math.exp %131 : vector<8x64xf32>
    %133 = vector.extract_strided_slice %95 {offsets = [0, 1], sizes = [8, 1], strides = [1, 1]} : vector<8x16xf32> to vector<8x1xf32>
    %134 = vector.extract_strided_slice %101 {offsets = [1, 0], sizes = [1, 64], strides = [1, 1]} : vector<16x64xf32> to vector<1x64xf32>
    %135 = vector.broadcast %133 : vector<8x1xf32> to vector<8x64xf32>
    %136 = vector.broadcast %134 : vector<1x64xf32> to vector<8x64xf32>
    %137 = arith.mulf %135, %136 : vector<8x64xf32>
    %138 = arith.mulf %132, %115 : vector<8x64xf32>
    %139 = arith.addf %138, %137 : vector<8x64xf32>
    %140 = vector.extract_strided_slice %96 {offsets = [0, 1], sizes = [8, 1], strides = [1, 1]} : vector<8x16xf32> to vector<8x1xf32>
    %141 = vector.broadcast %140 : vector<8x1xf32> to vector<8x64xf32>
    %142 = arith.mulf %139, %141 : vector<8x64xf32>
    %cst_32 = arith.constant dense<0.000000e+00> : vector<64xf32>
    %143 = vector.multi_reduction <add>, %142, %cst_32 [0] : vector<8x64xf32> to vector<64xf32>
    %144 = vector.shape_cast %143 : vector<64xf32> to vector<1x64xf32>
    %c1_i32 = arith.constant 1 : i32
    %145 = vector.broadcast %c1_i32 : i32 to vector<16x1xi32>
    %146 = arith.cmpi eq, %102, %145 : vector<16x1xi32>
    %147 = arith.extui %146 : vector<16x1xi1> to vector<16x1xi32>
    %148 = arith.sitofp %147 : vector<16x1xi32> to vector<16x1xf32>
    %149 = vector.broadcast %148 : vector<16x1xf32> to vector<16x64xf32>
    %150 = vector.broadcast %144 : vector<1x64xf32> to vector<16x64xf32>
    %151 = arith.mulf %149, %150 : vector<16x64xf32>
    %152 = arith.addf %128, %151 : vector<16x64xf32>
    %153 = vector.extract_strided_slice %92 {offsets = [2, 0], sizes = [1, 64], strides = [1, 1]} : vector<16x64xf32> to vector<1x64xf32>
    %154 = vector.broadcast %153 : vector<1x64xf32> to vector<8x64xf32>
    %155 = arith.mulf %154, %100 : vector<8x64xf32>
    %156 = math.exp %155 : vector<8x64xf32>
    %157 = vector.extract_strided_slice %95 {offsets = [0, 2], sizes = [8, 1], strides = [1, 1]} : vector<8x16xf32> to vector<8x1xf32>
    %158 = vector.extract_strided_slice %101 {offsets = [2, 0], sizes = [1, 64], strides = [1, 1]} : vector<16x64xf32> to vector<1x64xf32>
    %159 = vector.broadcast %157 : vector<8x1xf32> to vector<8x64xf32>
    %160 = vector.broadcast %158 : vector<1x64xf32> to vector<8x64xf32>
    %161 = arith.mulf %159, %160 : vector<8x64xf32>
    %162 = arith.mulf %156, %139 : vector<8x64xf32>
    %163 = arith.addf %162, %161 : vector<8x64xf32>
    %164 = vector.extract_strided_slice %96 {offsets = [0, 2], sizes = [8, 1], strides = [1, 1]} : vector<8x16xf32> to vector<8x1xf32>
    %165 = vector.broadcast %164 : vector<8x1xf32> to vector<8x64xf32>
    %166 = arith.mulf %163, %165 : vector<8x64xf32>
    %cst_33 = arith.constant dense<0.000000e+00> : vector<64xf32>
    %167 = vector.multi_reduction <add>, %166, %cst_33 [0] : vector<8x64xf32> to vector<64xf32>
    %168 = vector.shape_cast %167 : vector<64xf32> to vector<1x64xf32>
    %c2_i32 = arith.constant 2 : i32
    %169 = vector.broadcast %c2_i32 : i32 to vector<16x1xi32>
    %170 = arith.cmpi eq, %102, %169 : vector<16x1xi32>
    %171 = arith.extui %170 : vector<16x1xi1> to vector<16x1xi32>
    %172 = arith.sitofp %171 : vector<16x1xi32> to vector<16x1xf32>
    %173 = vector.broadcast %172 : vector<16x1xf32> to vector<16x64xf32>
    %174 = vector.broadcast %168 : vector<1x64xf32> to vector<16x64xf32>
    %175 = arith.mulf %173, %174 : vector<16x64xf32>
    %176 = arith.addf %152, %175 : vector<16x64xf32>
    %177 = vector.extract_strided_slice %92 {offsets = [3, 0], sizes = [1, 64], strides = [1, 1]} : vector<16x64xf32> to vector<1x64xf32>
    %178 = vector.broadcast %177 : vector<1x64xf32> to vector<8x64xf32>
    %179 = arith.mulf %178, %100 : vector<8x64xf32>
    %180 = math.exp %179 : vector<8x64xf32>
    %181 = vector.extract_strided_slice %95 {offsets = [0, 3], sizes = [8, 1], strides = [1, 1]} : vector<8x16xf32> to vector<8x1xf32>
    %182 = vector.extract_strided_slice %101 {offsets = [3, 0], sizes = [1, 64], strides = [1, 1]} : vector<16x64xf32> to vector<1x64xf32>
    %183 = vector.broadcast %181 : vector<8x1xf32> to vector<8x64xf32>
    %184 = vector.broadcast %182 : vector<1x64xf32> to vector<8x64xf32>
    %185 = arith.mulf %183, %184 : vector<8x64xf32>
    %186 = arith.mulf %180, %163 : vector<8x64xf32>
    %187 = arith.addf %186, %185 : vector<8x64xf32>
    %188 = vector.extract_strided_slice %96 {offsets = [0, 3], sizes = [8, 1], strides = [1, 1]} : vector<8x16xf32> to vector<8x1xf32>
    %189 = vector.broadcast %188 : vector<8x1xf32> to vector<8x64xf32>
    %190 = arith.mulf %187, %189 : vector<8x64xf32>
    %cst_34 = arith.constant dense<0.000000e+00> : vector<64xf32>
    %191 = vector.multi_reduction <add>, %190, %cst_34 [0] : vector<8x64xf32> to vector<64xf32>
    %192 = vector.shape_cast %191 : vector<64xf32> to vector<1x64xf32>
    %c3_i32 = arith.constant 3 : i32
    %193 = vector.broadcast %c3_i32 : i32 to vector<16x1xi32>
    %194 = arith.cmpi eq, %102, %193 : vector<16x1xi32>
    %195 = arith.extui %194 : vector<16x1xi1> to vector<16x1xi32>
    %196 = arith.sitofp %195 : vector<16x1xi32> to vector<16x1xf32>
    %197 = vector.broadcast %196 : vector<16x1xf32> to vector<16x64xf32>
    %198 = vector.broadcast %192 : vector<1x64xf32> to vector<16x64xf32>
    %199 = arith.mulf %197, %198 : vector<16x64xf32>
    %200 = arith.addf %176, %199 : vector<16x64xf32>
    %201 = vector.extract_strided_slice %92 {offsets = [4, 0], sizes = [1, 64], strides = [1, 1]} : vector<16x64xf32> to vector<1x64xf32>
    %202 = vector.broadcast %201 : vector<1x64xf32> to vector<8x64xf32>
    %203 = arith.mulf %202, %100 : vector<8x64xf32>
    %204 = math.exp %203 : vector<8x64xf32>
    %205 = vector.extract_strided_slice %95 {offsets = [0, 4], sizes = [8, 1], strides = [1, 1]} : vector<8x16xf32> to vector<8x1xf32>
    %206 = vector.extract_strided_slice %101 {offsets = [4, 0], sizes = [1, 64], strides = [1, 1]} : vector<16x64xf32> to vector<1x64xf32>
    %207 = vector.broadcast %205 : vector<8x1xf32> to vector<8x64xf32>
    %208 = vector.broadcast %206 : vector<1x64xf32> to vector<8x64xf32>
    %209 = arith.mulf %207, %208 : vector<8x64xf32>
    %210 = arith.mulf %204, %187 : vector<8x64xf32>
    %211 = arith.addf %210, %209 : vector<8x64xf32>
    %212 = vector.extract_strided_slice %96 {offsets = [0, 4], sizes = [8, 1], strides = [1, 1]} : vector<8x16xf32> to vector<8x1xf32>
    %213 = vector.broadcast %212 : vector<8x1xf32> to vector<8x64xf32>
    %214 = arith.mulf %211, %213 : vector<8x64xf32>
    %cst_35 = arith.constant dense<0.000000e+00> : vector<64xf32>
    %215 = vector.multi_reduction <add>, %214, %cst_35 [0] : vector<8x64xf32> to vector<64xf32>
    %216 = vector.shape_cast %215 : vector<64xf32> to vector<1x64xf32>
    %c4_i32 = arith.constant 4 : i32
    %217 = vector.broadcast %c4_i32 : i32 to vector<16x1xi32>
    %218 = arith.cmpi eq, %102, %217 : vector<16x1xi32>
    %219 = arith.extui %218 : vector<16x1xi1> to vector<16x1xi32>
    %220 = arith.sitofp %219 : vector<16x1xi32> to vector<16x1xf32>
    %221 = vector.broadcast %220 : vector<16x1xf32> to vector<16x64xf32>
    %222 = vector.broadcast %216 : vector<1x64xf32> to vector<16x64xf32>
    %223 = arith.mulf %221, %222 : vector<16x64xf32>
    %224 = arith.addf %200, %223 : vector<16x64xf32>
    %225 = vector.extract_strided_slice %92 {offsets = [5, 0], sizes = [1, 64], strides = [1, 1]} : vector<16x64xf32> to vector<1x64xf32>
    %226 = vector.broadcast %225 : vector<1x64xf32> to vector<8x64xf32>
    %227 = arith.mulf %226, %100 : vector<8x64xf32>
    %228 = math.exp %227 : vector<8x64xf32>
    %229 = vector.extract_strided_slice %95 {offsets = [0, 5], sizes = [8, 1], strides = [1, 1]} : vector<8x16xf32> to vector<8x1xf32>
    %230 = vector.extract_strided_slice %101 {offsets = [5, 0], sizes = [1, 64], strides = [1, 1]} : vector<16x64xf32> to vector<1x64xf32>
    %231 = vector.broadcast %229 : vector<8x1xf32> to vector<8x64xf32>
    %232 = vector.broadcast %230 : vector<1x64xf32> to vector<8x64xf32>
    %233 = arith.mulf %231, %232 : vector<8x64xf32>
    %234 = arith.mulf %228, %211 : vector<8x64xf32>
    %235 = arith.addf %234, %233 : vector<8x64xf32>
    %236 = vector.extract_strided_slice %96 {offsets = [0, 5], sizes = [8, 1], strides = [1, 1]} : vector<8x16xf32> to vector<8x1xf32>
    %237 = vector.broadcast %236 : vector<8x1xf32> to vector<8x64xf32>
    %238 = arith.mulf %235, %237 : vector<8x64xf32>
    %cst_36 = arith.constant dense<0.000000e+00> : vector<64xf32>
    %239 = vector.multi_reduction <add>, %238, %cst_36 [0] : vector<8x64xf32> to vector<64xf32>
    %240 = vector.shape_cast %239 : vector<64xf32> to vector<1x64xf32>
    %c5_i32 = arith.constant 5 : i32
    %241 = vector.broadcast %c5_i32 : i32 to vector<16x1xi32>
    %242 = arith.cmpi eq, %102, %241 : vector<16x1xi32>
    %243 = arith.extui %242 : vector<16x1xi1> to vector<16x1xi32>
    %244 = arith.sitofp %243 : vector<16x1xi32> to vector<16x1xf32>
    %245 = vector.broadcast %244 : vector<16x1xf32> to vector<16x64xf32>
    %246 = vector.broadcast %240 : vector<1x64xf32> to vector<16x64xf32>
    %247 = arith.mulf %245, %246 : vector<16x64xf32>
    %248 = arith.addf %224, %247 : vector<16x64xf32>
    %249 = vector.extract_strided_slice %92 {offsets = [6, 0], sizes = [1, 64], strides = [1, 1]} : vector<16x64xf32> to vector<1x64xf32>
    %250 = vector.broadcast %249 : vector<1x64xf32> to vector<8x64xf32>
    %251 = arith.mulf %250, %100 : vector<8x64xf32>
    %252 = math.exp %251 : vector<8x64xf32>
    %253 = vector.extract_strided_slice %95 {offsets = [0, 6], sizes = [8, 1], strides = [1, 1]} : vector<8x16xf32> to vector<8x1xf32>
    %254 = vector.extract_strided_slice %101 {offsets = [6, 0], sizes = [1, 64], strides = [1, 1]} : vector<16x64xf32> to vector<1x64xf32>
    %255 = vector.broadcast %253 : vector<8x1xf32> to vector<8x64xf32>
    %256 = vector.broadcast %254 : vector<1x64xf32> to vector<8x64xf32>
    %257 = arith.mulf %255, %256 : vector<8x64xf32>
    %258 = arith.mulf %252, %235 : vector<8x64xf32>
    %259 = arith.addf %258, %257 : vector<8x64xf32>
    %260 = vector.extract_strided_slice %96 {offsets = [0, 6], sizes = [8, 1], strides = [1, 1]} : vector<8x16xf32> to vector<8x1xf32>
    %261 = vector.broadcast %260 : vector<8x1xf32> to vector<8x64xf32>
    %262 = arith.mulf %259, %261 : vector<8x64xf32>
    %cst_37 = arith.constant dense<0.000000e+00> : vector<64xf32>
    %263 = vector.multi_reduction <add>, %262, %cst_37 [0] : vector<8x64xf32> to vector<64xf32>
    %264 = vector.shape_cast %263 : vector<64xf32> to vector<1x64xf32>
    %c6_i32 = arith.constant 6 : i32
    %265 = vector.broadcast %c6_i32 : i32 to vector<16x1xi32>
    %266 = arith.cmpi eq, %102, %265 : vector<16x1xi32>
    %267 = arith.extui %266 : vector<16x1xi1> to vector<16x1xi32>
    %268 = arith.sitofp %267 : vector<16x1xi32> to vector<16x1xf32>
    %269 = vector.broadcast %268 : vector<16x1xf32> to vector<16x64xf32>
    %270 = vector.broadcast %264 : vector<1x64xf32> to vector<16x64xf32>
    %271 = arith.mulf %269, %270 : vector<16x64xf32>
    %272 = arith.addf %248, %271 : vector<16x64xf32>
    %273 = vector.extract_strided_slice %92 {offsets = [7, 0], sizes = [1, 64], strides = [1, 1]} : vector<16x64xf32> to vector<1x64xf32>
    %274 = vector.broadcast %273 : vector<1x64xf32> to vector<8x64xf32>
    %275 = arith.mulf %274, %100 : vector<8x64xf32>
    %276 = math.exp %275 : vector<8x64xf32>
    %277 = vector.extract_strided_slice %95 {offsets = [0, 7], sizes = [8, 1], strides = [1, 1]} : vector<8x16xf32> to vector<8x1xf32>
    %278 = vector.extract_strided_slice %101 {offsets = [7, 0], sizes = [1, 64], strides = [1, 1]} : vector<16x64xf32> to vector<1x64xf32>
    %279 = vector.broadcast %277 : vector<8x1xf32> to vector<8x64xf32>
    %280 = vector.broadcast %278 : vector<1x64xf32> to vector<8x64xf32>
    %281 = arith.mulf %279, %280 : vector<8x64xf32>
    %282 = arith.mulf %276, %259 : vector<8x64xf32>
    %283 = arith.addf %282, %281 : vector<8x64xf32>
    %284 = vector.extract_strided_slice %96 {offsets = [0, 7], sizes = [8, 1], strides = [1, 1]} : vector<8x16xf32> to vector<8x1xf32>
    %285 = vector.broadcast %284 : vector<8x1xf32> to vector<8x64xf32>
    %286 = arith.mulf %283, %285 : vector<8x64xf32>
    %cst_38 = arith.constant dense<0.000000e+00> : vector<64xf32>
    %287 = vector.multi_reduction <add>, %286, %cst_38 [0] : vector<8x64xf32> to vector<64xf32>
    %288 = vector.shape_cast %287 : vector<64xf32> to vector<1x64xf32>
    %c7_i32 = arith.constant 7 : i32
    %289 = vector.broadcast %c7_i32 : i32 to vector<16x1xi32>
    %290 = arith.cmpi eq, %102, %289 : vector<16x1xi32>
    %291 = arith.extui %290 : vector<16x1xi1> to vector<16x1xi32>
    %292 = arith.sitofp %291 : vector<16x1xi32> to vector<16x1xf32>
    %293 = vector.broadcast %292 : vector<16x1xf32> to vector<16x64xf32>
    %294 = vector.broadcast %288 : vector<1x64xf32> to vector<16x64xf32>
    %295 = arith.mulf %293, %294 : vector<16x64xf32>
    %296 = arith.addf %272, %295 : vector<16x64xf32>
    %297 = vector.extract_strided_slice %92 {offsets = [8, 0], sizes = [1, 64], strides = [1, 1]} : vector<16x64xf32> to vector<1x64xf32>
    %298 = vector.broadcast %297 : vector<1x64xf32> to vector<8x64xf32>
    %299 = arith.mulf %298, %100 : vector<8x64xf32>
    %300 = math.exp %299 : vector<8x64xf32>
    %301 = vector.extract_strided_slice %95 {offsets = [0, 8], sizes = [8, 1], strides = [1, 1]} : vector<8x16xf32> to vector<8x1xf32>
    %302 = vector.extract_strided_slice %101 {offsets = [8, 0], sizes = [1, 64], strides = [1, 1]} : vector<16x64xf32> to vector<1x64xf32>
    %303 = vector.broadcast %301 : vector<8x1xf32> to vector<8x64xf32>
    %304 = vector.broadcast %302 : vector<1x64xf32> to vector<8x64xf32>
    %305 = arith.mulf %303, %304 : vector<8x64xf32>
    %306 = arith.mulf %300, %283 : vector<8x64xf32>
    %307 = arith.addf %306, %305 : vector<8x64xf32>
    %308 = vector.extract_strided_slice %96 {offsets = [0, 8], sizes = [8, 1], strides = [1, 1]} : vector<8x16xf32> to vector<8x1xf32>
    %309 = vector.broadcast %308 : vector<8x1xf32> to vector<8x64xf32>
    %310 = arith.mulf %307, %309 : vector<8x64xf32>
    %cst_39 = arith.constant dense<0.000000e+00> : vector<64xf32>
    %311 = vector.multi_reduction <add>, %310, %cst_39 [0] : vector<8x64xf32> to vector<64xf32>
    %312 = vector.shape_cast %311 : vector<64xf32> to vector<1x64xf32>
    %c8_i32 = arith.constant 8 : i32
    %313 = vector.broadcast %c8_i32 : i32 to vector<16x1xi32>
    %314 = arith.cmpi eq, %102, %313 : vector<16x1xi32>
    %315 = arith.extui %314 : vector<16x1xi1> to vector<16x1xi32>
    %316 = arith.sitofp %315 : vector<16x1xi32> to vector<16x1xf32>
    %317 = vector.broadcast %316 : vector<16x1xf32> to vector<16x64xf32>
    %318 = vector.broadcast %312 : vector<1x64xf32> to vector<16x64xf32>
    %319 = arith.mulf %317, %318 : vector<16x64xf32>
    %320 = arith.addf %296, %319 : vector<16x64xf32>
    %321 = vector.extract_strided_slice %92 {offsets = [9, 0], sizes = [1, 64], strides = [1, 1]} : vector<16x64xf32> to vector<1x64xf32>
    %322 = vector.broadcast %321 : vector<1x64xf32> to vector<8x64xf32>
    %323 = arith.mulf %322, %100 : vector<8x64xf32>
    %324 = math.exp %323 : vector<8x64xf32>
    %325 = vector.extract_strided_slice %95 {offsets = [0, 9], sizes = [8, 1], strides = [1, 1]} : vector<8x16xf32> to vector<8x1xf32>
    %326 = vector.extract_strided_slice %101 {offsets = [9, 0], sizes = [1, 64], strides = [1, 1]} : vector<16x64xf32> to vector<1x64xf32>
    %327 = vector.broadcast %325 : vector<8x1xf32> to vector<8x64xf32>
    %328 = vector.broadcast %326 : vector<1x64xf32> to vector<8x64xf32>
    %329 = arith.mulf %327, %328 : vector<8x64xf32>
    %330 = arith.mulf %324, %307 : vector<8x64xf32>
    %331 = arith.addf %330, %329 : vector<8x64xf32>
    %332 = vector.extract_strided_slice %96 {offsets = [0, 9], sizes = [8, 1], strides = [1, 1]} : vector<8x16xf32> to vector<8x1xf32>
    %333 = vector.broadcast %332 : vector<8x1xf32> to vector<8x64xf32>
    %334 = arith.mulf %331, %333 : vector<8x64xf32>
    %cst_40 = arith.constant dense<0.000000e+00> : vector<64xf32>
    %335 = vector.multi_reduction <add>, %334, %cst_40 [0] : vector<8x64xf32> to vector<64xf32>
    %336 = vector.shape_cast %335 : vector<64xf32> to vector<1x64xf32>
    %c9_i32 = arith.constant 9 : i32
    %337 = vector.broadcast %c9_i32 : i32 to vector<16x1xi32>
    %338 = arith.cmpi eq, %102, %337 : vector<16x1xi32>
    %339 = arith.extui %338 : vector<16x1xi1> to vector<16x1xi32>
    %340 = arith.sitofp %339 : vector<16x1xi32> to vector<16x1xf32>
    %341 = vector.broadcast %340 : vector<16x1xf32> to vector<16x64xf32>
    %342 = vector.broadcast %336 : vector<1x64xf32> to vector<16x64xf32>
    %343 = arith.mulf %341, %342 : vector<16x64xf32>
    %344 = arith.addf %320, %343 : vector<16x64xf32>
    %345 = vector.extract_strided_slice %92 {offsets = [10, 0], sizes = [1, 64], strides = [1, 1]} : vector<16x64xf32> to vector<1x64xf32>
    %346 = vector.broadcast %345 : vector<1x64xf32> to vector<8x64xf32>
    %347 = arith.mulf %346, %100 : vector<8x64xf32>
    %348 = math.exp %347 : vector<8x64xf32>
    %349 = vector.extract_strided_slice %95 {offsets = [0, 10], sizes = [8, 1], strides = [1, 1]} : vector<8x16xf32> to vector<8x1xf32>
    %350 = vector.extract_strided_slice %101 {offsets = [10, 0], sizes = [1, 64], strides = [1, 1]} : vector<16x64xf32> to vector<1x64xf32>
    %351 = vector.broadcast %349 : vector<8x1xf32> to vector<8x64xf32>
    %352 = vector.broadcast %350 : vector<1x64xf32> to vector<8x64xf32>
    %353 = arith.mulf %351, %352 : vector<8x64xf32>
    %354 = arith.mulf %348, %331 : vector<8x64xf32>
    %355 = arith.addf %354, %353 : vector<8x64xf32>
    %356 = vector.extract_strided_slice %96 {offsets = [0, 10], sizes = [8, 1], strides = [1, 1]} : vector<8x16xf32> to vector<8x1xf32>
    %357 = vector.broadcast %356 : vector<8x1xf32> to vector<8x64xf32>
    %358 = arith.mulf %355, %357 : vector<8x64xf32>
    %cst_41 = arith.constant dense<0.000000e+00> : vector<64xf32>
    %359 = vector.multi_reduction <add>, %358, %cst_41 [0] : vector<8x64xf32> to vector<64xf32>
    %360 = vector.shape_cast %359 : vector<64xf32> to vector<1x64xf32>
    %c10_i32 = arith.constant 10 : i32
    %361 = vector.broadcast %c10_i32 : i32 to vector<16x1xi32>
    %362 = arith.cmpi eq, %102, %361 : vector<16x1xi32>
    %363 = arith.extui %362 : vector<16x1xi1> to vector<16x1xi32>
    %364 = arith.sitofp %363 : vector<16x1xi32> to vector<16x1xf32>
    %365 = vector.broadcast %364 : vector<16x1xf32> to vector<16x64xf32>
    %366 = vector.broadcast %360 : vector<1x64xf32> to vector<16x64xf32>
    %367 = arith.mulf %365, %366 : vector<16x64xf32>
    %368 = arith.addf %344, %367 : vector<16x64xf32>
    %369 = vector.extract_strided_slice %92 {offsets = [11, 0], sizes = [1, 64], strides = [1, 1]} : vector<16x64xf32> to vector<1x64xf32>
    %370 = vector.broadcast %369 : vector<1x64xf32> to vector<8x64xf32>
    %371 = arith.mulf %370, %100 : vector<8x64xf32>
    %372 = math.exp %371 : vector<8x64xf32>
    %373 = vector.extract_strided_slice %95 {offsets = [0, 11], sizes = [8, 1], strides = [1, 1]} : vector<8x16xf32> to vector<8x1xf32>
    %374 = vector.extract_strided_slice %101 {offsets = [11, 0], sizes = [1, 64], strides = [1, 1]} : vector<16x64xf32> to vector<1x64xf32>
    %375 = vector.broadcast %373 : vector<8x1xf32> to vector<8x64xf32>
    %376 = vector.broadcast %374 : vector<1x64xf32> to vector<8x64xf32>
    %377 = arith.mulf %375, %376 : vector<8x64xf32>
    %378 = arith.mulf %372, %355 : vector<8x64xf32>
    %379 = arith.addf %378, %377 : vector<8x64xf32>
    %380 = vector.extract_strided_slice %96 {offsets = [0, 11], sizes = [8, 1], strides = [1, 1]} : vector<8x16xf32> to vector<8x1xf32>
    %381 = vector.broadcast %380 : vector<8x1xf32> to vector<8x64xf32>
    %382 = arith.mulf %379, %381 : vector<8x64xf32>
    %cst_42 = arith.constant dense<0.000000e+00> : vector<64xf32>
    %383 = vector.multi_reduction <add>, %382, %cst_42 [0] : vector<8x64xf32> to vector<64xf32>
    %384 = vector.shape_cast %383 : vector<64xf32> to vector<1x64xf32>
    %c11_i32 = arith.constant 11 : i32
    %385 = vector.broadcast %c11_i32 : i32 to vector<16x1xi32>
    %386 = arith.cmpi eq, %102, %385 : vector<16x1xi32>
    %387 = arith.extui %386 : vector<16x1xi1> to vector<16x1xi32>
    %388 = arith.sitofp %387 : vector<16x1xi32> to vector<16x1xf32>
    %389 = vector.broadcast %388 : vector<16x1xf32> to vector<16x64xf32>
    %390 = vector.broadcast %384 : vector<1x64xf32> to vector<16x64xf32>
    %391 = arith.mulf %389, %390 : vector<16x64xf32>
    %392 = arith.addf %368, %391 : vector<16x64xf32>
    %393 = vector.extract_strided_slice %92 {offsets = [12, 0], sizes = [1, 64], strides = [1, 1]} : vector<16x64xf32> to vector<1x64xf32>
    %394 = vector.broadcast %393 : vector<1x64xf32> to vector<8x64xf32>
    %395 = arith.mulf %394, %100 : vector<8x64xf32>
    %396 = math.exp %395 : vector<8x64xf32>
    %397 = vector.extract_strided_slice %95 {offsets = [0, 12], sizes = [8, 1], strides = [1, 1]} : vector<8x16xf32> to vector<8x1xf32>
    %398 = vector.extract_strided_slice %101 {offsets = [12, 0], sizes = [1, 64], strides = [1, 1]} : vector<16x64xf32> to vector<1x64xf32>
    %399 = vector.broadcast %397 : vector<8x1xf32> to vector<8x64xf32>
    %400 = vector.broadcast %398 : vector<1x64xf32> to vector<8x64xf32>
    %401 = arith.mulf %399, %400 : vector<8x64xf32>
    %402 = arith.mulf %396, %379 : vector<8x64xf32>
    %403 = arith.addf %402, %401 : vector<8x64xf32>
    %404 = vector.extract_strided_slice %96 {offsets = [0, 12], sizes = [8, 1], strides = [1, 1]} : vector<8x16xf32> to vector<8x1xf32>
    %405 = vector.broadcast %404 : vector<8x1xf32> to vector<8x64xf32>
    %406 = arith.mulf %403, %405 : vector<8x64xf32>
    %cst_43 = arith.constant dense<0.000000e+00> : vector<64xf32>
    %407 = vector.multi_reduction <add>, %406, %cst_43 [0] : vector<8x64xf32> to vector<64xf32>
    %408 = vector.shape_cast %407 : vector<64xf32> to vector<1x64xf32>
    %c12_i32 = arith.constant 12 : i32
    %409 = vector.broadcast %c12_i32 : i32 to vector<16x1xi32>
    %410 = arith.cmpi eq, %102, %409 : vector<16x1xi32>
    %411 = arith.extui %410 : vector<16x1xi1> to vector<16x1xi32>
    %412 = arith.sitofp %411 : vector<16x1xi32> to vector<16x1xf32>
    %413 = vector.broadcast %412 : vector<16x1xf32> to vector<16x64xf32>
    %414 = vector.broadcast %408 : vector<1x64xf32> to vector<16x64xf32>
    %415 = arith.mulf %413, %414 : vector<16x64xf32>
    %416 = arith.addf %392, %415 : vector<16x64xf32>
    %417 = vector.extract_strided_slice %92 {offsets = [13, 0], sizes = [1, 64], strides = [1, 1]} : vector<16x64xf32> to vector<1x64xf32>
    %418 = vector.broadcast %417 : vector<1x64xf32> to vector<8x64xf32>
    %419 = arith.mulf %418, %100 : vector<8x64xf32>
    %420 = math.exp %419 : vector<8x64xf32>
    %421 = vector.extract_strided_slice %95 {offsets = [0, 13], sizes = [8, 1], strides = [1, 1]} : vector<8x16xf32> to vector<8x1xf32>
    %422 = vector.extract_strided_slice %101 {offsets = [13, 0], sizes = [1, 64], strides = [1, 1]} : vector<16x64xf32> to vector<1x64xf32>
    %423 = vector.broadcast %421 : vector<8x1xf32> to vector<8x64xf32>
    %424 = vector.broadcast %422 : vector<1x64xf32> to vector<8x64xf32>
    %425 = arith.mulf %423, %424 : vector<8x64xf32>
    %426 = arith.mulf %420, %403 : vector<8x64xf32>
    %427 = arith.addf %426, %425 : vector<8x64xf32>
    %428 = vector.extract_strided_slice %96 {offsets = [0, 13], sizes = [8, 1], strides = [1, 1]} : vector<8x16xf32> to vector<8x1xf32>
    %429 = vector.broadcast %428 : vector<8x1xf32> to vector<8x64xf32>
    %430 = arith.mulf %427, %429 : vector<8x64xf32>
    %cst_44 = arith.constant dense<0.000000e+00> : vector<64xf32>
    %431 = vector.multi_reduction <add>, %430, %cst_44 [0] : vector<8x64xf32> to vector<64xf32>
    %432 = vector.shape_cast %431 : vector<64xf32> to vector<1x64xf32>
    %c13_i32 = arith.constant 13 : i32
    %433 = vector.broadcast %c13_i32 : i32 to vector<16x1xi32>
    %434 = arith.cmpi eq, %102, %433 : vector<16x1xi32>
    %435 = arith.extui %434 : vector<16x1xi1> to vector<16x1xi32>
    %436 = arith.sitofp %435 : vector<16x1xi32> to vector<16x1xf32>
    %437 = vector.broadcast %436 : vector<16x1xf32> to vector<16x64xf32>
    %438 = vector.broadcast %432 : vector<1x64xf32> to vector<16x64xf32>
    %439 = arith.mulf %437, %438 : vector<16x64xf32>
    %440 = arith.addf %416, %439 : vector<16x64xf32>
    %441 = vector.extract_strided_slice %92 {offsets = [14, 0], sizes = [1, 64], strides = [1, 1]} : vector<16x64xf32> to vector<1x64xf32>
    %442 = vector.broadcast %441 : vector<1x64xf32> to vector<8x64xf32>
    %443 = arith.mulf %442, %100 : vector<8x64xf32>
    %444 = math.exp %443 : vector<8x64xf32>
    %445 = vector.extract_strided_slice %95 {offsets = [0, 14], sizes = [8, 1], strides = [1, 1]} : vector<8x16xf32> to vector<8x1xf32>
    %446 = vector.extract_strided_slice %101 {offsets = [14, 0], sizes = [1, 64], strides = [1, 1]} : vector<16x64xf32> to vector<1x64xf32>
    %447 = vector.broadcast %445 : vector<8x1xf32> to vector<8x64xf32>
    %448 = vector.broadcast %446 : vector<1x64xf32> to vector<8x64xf32>
    %449 = arith.mulf %447, %448 : vector<8x64xf32>
    %450 = arith.mulf %444, %427 : vector<8x64xf32>
    %451 = arith.addf %450, %449 : vector<8x64xf32>
    %452 = vector.extract_strided_slice %96 {offsets = [0, 14], sizes = [8, 1], strides = [1, 1]} : vector<8x16xf32> to vector<8x1xf32>
    %453 = vector.broadcast %452 : vector<8x1xf32> to vector<8x64xf32>
    %454 = arith.mulf %451, %453 : vector<8x64xf32>
    %cst_45 = arith.constant dense<0.000000e+00> : vector<64xf32>
    %455 = vector.multi_reduction <add>, %454, %cst_45 [0] : vector<8x64xf32> to vector<64xf32>
    %456 = vector.shape_cast %455 : vector<64xf32> to vector<1x64xf32>
    %c14_i32 = arith.constant 14 : i32
    %457 = vector.broadcast %c14_i32 : i32 to vector<16x1xi32>
    %458 = arith.cmpi eq, %102, %457 : vector<16x1xi32>
    %459 = arith.extui %458 : vector<16x1xi1> to vector<16x1xi32>
    %460 = arith.sitofp %459 : vector<16x1xi32> to vector<16x1xf32>
    %461 = vector.broadcast %460 : vector<16x1xf32> to vector<16x64xf32>
    %462 = vector.broadcast %456 : vector<1x64xf32> to vector<16x64xf32>
    %463 = arith.mulf %461, %462 : vector<16x64xf32>
    %464 = arith.addf %440, %463 : vector<16x64xf32>
    %465 = vector.extract_strided_slice %92 {offsets = [15, 0], sizes = [1, 64], strides = [1, 1]} : vector<16x64xf32> to vector<1x64xf32>
    %466 = vector.broadcast %465 : vector<1x64xf32> to vector<8x64xf32>
    %467 = arith.mulf %466, %100 : vector<8x64xf32>
    %468 = math.exp %467 : vector<8x64xf32>
    %469 = vector.extract_strided_slice %95 {offsets = [0, 15], sizes = [8, 1], strides = [1, 1]} : vector<8x16xf32> to vector<8x1xf32>
    %470 = vector.extract_strided_slice %101 {offsets = [15, 0], sizes = [1, 64], strides = [1, 1]} : vector<16x64xf32> to vector<1x64xf32>
    %471 = vector.broadcast %469 : vector<8x1xf32> to vector<8x64xf32>
    %472 = vector.broadcast %470 : vector<1x64xf32> to vector<8x64xf32>
    %473 = arith.mulf %471, %472 : vector<8x64xf32>
    %474 = arith.mulf %468, %451 : vector<8x64xf32>
    %475 = arith.addf %474, %473 : vector<8x64xf32>
    %476 = vector.extract_strided_slice %96 {offsets = [0, 15], sizes = [8, 1], strides = [1, 1]} : vector<8x16xf32> to vector<8x1xf32>
    %477 = vector.broadcast %476 : vector<8x1xf32> to vector<8x64xf32>
    %478 = arith.mulf %475, %477 : vector<8x64xf32>
    %cst_46 = arith.constant dense<0.000000e+00> : vector<64xf32>
    %479 = vector.multi_reduction <add>, %478, %cst_46 [0] : vector<8x64xf32> to vector<64xf32>
    %480 = vector.shape_cast %479 : vector<64xf32> to vector<1x64xf32>
    %c15_i32 = arith.constant 15 : i32
    %481 = vector.broadcast %c15_i32 : i32 to vector<16x1xi32>
    %482 = arith.cmpi eq, %102, %481 : vector<16x1xi32>
    %483 = arith.extui %482 : vector<16x1xi1> to vector<16x1xi32>
    %484 = arith.sitofp %483 : vector<16x1xi32> to vector<16x1xf32>
    %485 = vector.broadcast %484 : vector<16x1xf32> to vector<16x64xf32>
    %486 = vector.broadcast %480 : vector<1x64xf32> to vector<16x64xf32>
    %487 = arith.mulf %485, %486 : vector<16x64xf32>
    %488 = arith.addf %464, %487 : vector<16x64xf32>
    %c199 = arith.constant 199 : index
    %c0_47 = arith.constant 0 : index
    %489 = vector.load %arg1[%c199, %c0_47] : memref<200x160xf32, #tpu.memory_space<vmem>>, vector<1x64xf32>
    %490 = vector.broadcast %489 : vector<1x64xf32> to vector<16x64xf32>
    %491 = arith.mulf %490, %73 : vector<16x64xf32>
    %492 = arith.addf %488, %491 : vector<16x64xf32>
    %493 = arith.negf %39 : vector<16x64xf32>
    %494 = math.exp %493 : vector<16x64xf32>
    %cst_48 = arith.constant 1.000000e+00 : f32
    %495 = vector.broadcast %cst_48 : f32 to vector<16x64xf32>
    %496 = arith.addf %495, %494 : vector<16x64xf32>
    %497 = arith.divf %495, %496 : vector<16x64xf32>
    %498 = arith.mulf %39, %497 : vector<16x64xf32>
    %499 = arith.mulf %492, %498 : vector<16x64xf32>
    %c96 = arith.constant 96 : index
    %c0_49 = arith.constant 0 : index
    %500 = vector.load %arg1[%c96, %c0_49] : memref<200x160xf32, #tpu.memory_space<vmem>>, vector<64x32xf32>
    %cst_50 = arith.constant dense<0.000000e+00> : vector<16x32xf32>
    %501 = tpu.matmul %499, %500, %cst_50 {dimension_numbers = #tpu.dot_dimension_numbers<[1], [0], [0], [1], [0, 0, 1, 1], [], []>} : vector<16x64xf32>, vector<64x32xf32>, vector<16x32xf32> -> vector<16x32xf32>
    %c195 = arith.constant 195 : index
    %c0_51 = arith.constant 0 : index
    %502 = vector.load %arg1[%c195, %c0_51] : memref<200x160xf32, #tpu.memory_space<vmem>>, vector<1x32xf32>
    %503 = vector.broadcast %502 : vector<1x32xf32> to vector<16x32xf32>
    %504 = arith.addf %501, %503 : vector<16x32xf32>
    %505 = arith.addf %37, %504 : vector<16x32xf32>
    %c0_52 = arith.constant 0 : index
    %c0_53 = arith.constant 0 : index
    %506 = vector.load %arg2[%c0_52, %c0_53] : memref<16x32xf32, #tpu.memory_space<vmem>>, vector<16x32xf32>
    tpu.vector_store %arg2[%c0_52, %c0_53], %505 {strides = array<i32>} : memref<16x32xf32, #tpu.memory_space<vmem>>, vector<16x32xf32>,
    return
  }
}

</mosaic_0001>

<llo_original>
// kernel: tpu_custom_call.1
$region0: #{tpu_custom_call.1}
  #allocation0 [shape = 'u32[]', space=smem, size = 0x4, offset = 0x4, fixed_abs, tag = 'smem constant byte address 0x4 - core index']
  #allocation1 [shape = 'u32[144,128]{1,0:T(1,128)}', space=vmem, size = 0x12000, scoped, tag = 'internal scratch']
  %s0 = inlined_call_operand.vmem [shape: f32[32,32], index: 0, kind: input, shape index: {}]
  %s1 = inlined_call_operand.vmem [shape: f32[200,160], index: 1, kind: input, shape index: {}]
  %s2 = inlined_call_operand.hbm [shape: f32[16,32], index: 2, kind: output, shape index: {}]
  %s3 = sld [smem:[#allocation0]]
  $region18: #{tpu_custom_call.1} parent=0
    _
  %s5 = ssub.s32 1, %s3
  %s6 = scalar_select 0, %s5, %s3
  $region1: #{tpu_custom_call.1} parent=0
    #allocation2 [shape = 'u8[8192]{0}', space=vmem, size = 0x2000, scoped, tag = 'output window, operand 0, single buffered']
    #allocation3 [shape = 's32[1]{0}', space=sflag, size = 0x4, scoped, tag = 'scoped memory for tpu_custom_call.1']
    %7 = vsyncpa [#allocation3], 0
    // Predicated region
    $region2: #{tpu_custom_call.1} parent=1 // pred_check
      _
    $region3: #{tpu_custom_call.1} parent=1 // pred_check_branch
      %9 = sbr.rel (0) target = $region5
    $region4: #{tpu_custom_call.1} parent=1 // pred_region
      _
    $region5: #{tpu_custom_call.1} parent=1 // pred_fallthru
      _
    // Predicated region
    $region6: #{tpu_custom_call.1} parent=1 // pred_check
      _
    $region7: #{tpu_custom_call.1} parent=1 // pred_check_branch
      %11 = sbr.rel (0) target = $region9
    $region8: #{tpu_custom_call.1} parent=1 // pred_region
      _
    $region9: #{tpu_custom_call.1} parent=1 // pred_fallthru
      _
    %v12 = vld [vmem:[%s0] sm:$0xff]
    %v13 = vld [vmem:[%s0 + $0x8] sm:$0xff]
    %v14 = vld [vmem:[%s0 + $0x10] sm:$0xff]
    %v15 = vld [vmem:[%s0 + $0x18] sm:$0xff]
    %v16 = vld [vmem:[%s1] sm:$0xff]
    %v17 = vld [vmem:[%s1 + $0x8] sm:$0xff]
    %v18 = vld [vmem:[%s1 + $0x10] sm:$0xff]
    %v19 = vld [vmem:[%s1 + $0x18] sm:$0xff]
    %v20 = vld [vmem:[%s1 + $0x20] sm:$0xff]
    %v21 = vld [vmem:[%s1 + $0x28] sm:$0xff]
    %v22 = vld [vmem:[%s1 + $0x30] sm:$0xff]
    %v23 = vld [vmem:[%s1 + $0x38] sm:$0xff]
    %vm24 = vcmask 261120
    %v26 = vsel %vm24, %v12, 0
    %v29 = vsel %vm24, %v13, 0
    %31 = vmatprep.subr.mxu0 %v17
    %32 = vmatpush1.msra.mxu0 %v16
    %33 = vmatprep.subr.mxu0 %v19
    %34 = vmatpush1.msra.mxu0 %v18
    %35 = vmatprep.subr.mxu0 %v21
    %36 = vmatpush1.msra.mxu0 %v20
    %37 = vmatprep.subr.mxu0 %v23
    %38 = vmatpush1.msra.mxu0 %v22
    %39 = vmatprep.subr.mxu0 0.0
    %40 = vmatpush1.msra.mxu0 0.0
    %41 = vmatprep.subr.mxu0 0.0
    %42 = vmatpush1.msra.mxu0 0.0
    %43 = vmatprep.subr.mxu0 0.0
    %44 = vmatpush1.msra.mxu0 0.0
    %45 = vmatprep.subr.mxu0 0.0
    %46 = vmatpush1.msra.mxu0 0.0
    %47 = vmatprep.subr.mxu0 0.0
    %48 = vmatpush1.msra.mxu0 0.0
    %49 = vmatprep.subr.mxu0 0.0
    %50 = vmatpush1.msra.mxu0 0.0
    %51 = vmatprep.subr.mxu0 0.0
    %52 = vmatpush1.msra.mxu0 0.0
    %53 = vmatprep.subr.mxu0 0.0
    %54 = vmatpush1.msra.mxu0 0.0
    %55 = vmatprep.subr.mxu0 0.0
    %56 = vmatpush1.msra.mxu0 0.0
    %57 = vmatprep.subr.mxu0 0.0
    %58 = vmatpush1.msra.mxu0 0.0
    %59 = vmatprep.subr.mxu0 0.0
    %60 = vmatpush1.msra.mxu0 0.0
    %61 = vmatprep.subr.mxu0 0.0
    %62 = vmatpush1.msra.mxu0 0.0
    %63 = vmatprep.subr.mxu0 0.0
    %64 = vmatpush1.msra.mxu0 0.0
    %65 = vmatprep.subr.mxu0 0.0
    %66 = vmatpush1.msra.mxu0 0.0
    %67 = vmatprep.subr.mxu0 0.0
    %68 = vmatpush1.msra.mxu0 0.0
    %69 = vmatprep.subr.mxu0 0.0
    %70 = vmatpush1.msra.mxu0 0.0
    %71 = vmatprep.subr.mxu0 0.0
    %72 = vmatpush1.msra.mxu0 0.0
    %73 = vmatprep.subr.mxu0 0.0
    %74 = vmatpush1.msra.mxu0 0.0
    %75 = vmatprep.subr.mxu0 0.0
    %76 = vmatpush1.msra.mxu0 0.0
    %77 = vmatprep.subr.mxu0 0.0
    %78 = vmatpush1.msra.mxu0 0.0
    %79 = vmatprep.subr.mxu0 0.0
    %80 = vmatpush1.msra.mxu0 0.0
    %81 = vmatprep.subr.mxu0 0.0
    %82 = vmatpush1.msra.mxu0 0.0
    %83 = vmatprep.subr.mxu0 0.0
    %84 = vmatpush1.msra.mxu0 0.0
    %85 = vmatprep.subr.mxu0 0.0
    %86 = vmatpush1.msra.mxu0 0.0
    %87 = vmatprep.subr.mxu0 0.0
    %88 = vmatpush1.msra.mxu0 0.0
    %89 = vmatprep.subr.mxu0 0.0
    %90 = vmatpush1.msra.mxu0 0.0
    %91 = vmatprep.subr.mxu0 0.0
    %92 = vmatpush1.msra.mxu0 0.0
    %93 = vmatprep.subr.mxu0 0.0
    %94 = vmatpush1.msra.mxu0 0.0
    %95 = vmatprep.mubr.f32.mxu0 0.0
    %96 = vmatmul.mubr.f32.gmra.mrb[0].mxu0 %v26
    %v97 = vpop.f32.mrb[0].mxu0
    %v98 = vadd.f32 0.0, %v97
    %v99 = vpop.f32.mrb[0].mxu0
    %v100 = vadd.f32 0.0, %v99
    %101 = vmatprep.mubr.f32.mxu0 0.0
    %102 = vmatmul.mubr.f32.gmra.mrb[0].mxu0 %v29
    %v103 = vpop.f32.mrb[0].mxu0
    %v104 = vadd.f32 0.0, %v103
    %v105 = vpop.f32.mrb[0].mxu0
    %v106 = vadd.f32 0.0, %v105
    %107 = vdwg.mxu0
    %v108 = vld [vmem:[%s1 + $0x184] ss:$0 sm:$0xff]
    %v109 = vadd.f32 %v98, %v108
    %v110 = vadd.f32 %v104, %v108
    %v111 = vld [vmem:[%s1 + $0x180] ss:$0 sm:$0xff]
    %vm112 = vcmask 130048
    %v114 = vsel %vm112, %v14, 0
    %v117 = vsel %vm112, %v15, 0
    %119 = vmatprep.subr.mxu0 0.0
    %120 = vmatpush1.msra.mxu0 %v100
    %121 = vmatprep.subr.mxu0 0.0
    %122 = vmatpush1.msra.mxu0 %v106
    %123 = vmatprep.subr.mxu0 0.0
    %124 = vmatpush1.msra.mxu0 0.0
    %125 = vmatprep.subr.mxu0 0.0
    %126 = vmatpush1.msra.mxu0 0.0
    %127 = vmatprep.subr.mxu0 0.0
    %128 = vmatpush1.msra.mxu0 0.0
    %129 = vmatprep.subr.mxu0 0.0
    %130 = vmatpush1.msra.mxu0 0.0
    %131 = vmatprep.subr.mxu0 0.0
    %132 = vmatpush1.msra.mxu0 0.0
    %133 = vmatprep.subr.mxu0 0.0
    %134 = vmatpush1.msra.mxu0 0.0
    %135 = vmatprep.subr.mxu0 0.0
    %136 = vmatpush1.msra.mxu0 0.0
    %137 = vmatprep.subr.mxu0 0.0
    %138 = vmatpush1.msra.mxu0 0.0
    %139 = vmatprep.subr.mxu0 0.0
    %140 = vmatpush1.msra.mxu0 0.0
    %141 = vmatprep.subr.mxu0 0.0
    %142 = vmatpush1.msra.mxu0 0.0
    %143 = vmatprep.subr.mxu0 0.0
    %144 = vmatpush1.msra.mxu0 0.0
    %145 = vmatprep.subr.mxu0 0.0
    %146 = vmatpush1.msra.mxu0 0.0
    %147 = vmatprep.subr.mxu0 0.0
    %148 = vmatpush1.msra.mxu0 0.0
    %149 = vmatprep.subr.mxu0 0.0
    %150 = vmatpush1.msra.mxu0 0.0
    %151 = vmatprep.subr.mxu0 0.0
    %152 = vmatpush1.msra.mxu0 0.0
    %153 = vmatprep.subr.mxu0 0.0
    %154 = vmatpush1.msra.mxu0 0.0
    %155 = vmatprep.subr.mxu0 0.0
    %156 = vmatpush1.msra.mxu0 0.0
    %157 = vmatprep.subr.mxu0 0.0
    %158 = vmatpush1.msra.mxu0 0.0
    %159 = vmatprep.subr.mxu0 0.0
    %160 = vmatpush1.msra.mxu0 0.0
    %161 = vmatprep.subr.mxu0 0.0
    %162 = vmatpush1.msra.mxu0 0.0
    %163 = vmatprep.subr.mxu0 0.0
    %164 = vmatpush1.msra.mxu0 0.0
    %165 = vmatprep.subr.mxu0 0.0
    %166 = vmatpush1.msra.mxu0 0.0
    %167 = vmatprep.subr.mxu0 0.0
    %168 = vmatpush1.msra.mxu0 0.0
    %169 = vmatprep.subr.mxu0 0.0
    %170 = vmatpush1.msra.mxu0 0.0
    %171 = vmatprep.subr.mxu0 0.0
    %172 = vmatpush1.msra.mxu0 0.0
    %173 = vmatprep.subr.mxu0 0.0
    %174 = vmatpush1.msra.mxu0 0.0
    %175 = vmatprep.subr.mxu0 0.0
    %176 = vmatpush1.msra.mxu0 0.0
    %177 = vmatprep.subr.mxu0 0.0
    %178 = vmatpush1.msra.mxu0 0.0
    %179 = vmatprep.subr.mxu0 0.0
    %180 = vmatpush1.msra.mxu0 0.0
    %181 = vmatprep.subr.mxu0 0.0
    %182 = vmatpush1.msra.mxu0 0.0
    %183 = vmatprep.mubr.f32.mxu0 0.0
    %184 = vmatmul.mubr.f32.gmra.mrb[0].mxu0 %v114
    %v185 = vpop.f32.mrb[0].mxu0
    %v186 = vadd.f32 %v111, %v185
    %v187 = vpop.f32.mrb[0].mxu0
    %188 = vmatprep.mubr.f32.mxu0 0.0
    %189 = vmatmul.mubr.f32.gmra.mrb[0].mxu0 %v117
    %v190 = vpop.f32.mrb[0].mxu0
    %v191 = vadd.f32 %v111, %v190
    %v192 = vpop.f32.mrb[0].mxu0
    %193 = vdwg.mxu0
    %v194 = vadd.f32 %v186, %v12
    %v195 = vadd.f32 %v191, %v13
    %v196 = vsel %vm24, %v194, 0.0
    %v197 = vsel %vm24, %v195, 0.0
    %v198 = vadd.f32 %v196, %v197
    %v199 = vrot.slane %v198, 4
    %v200 = vadd.f32 %v198, %v199
    %v201 = vrot.slane %v200, 2
    %v202 = vadd.f32 %v200, %v201
    %v203 = vrot.slane %v202, 1
    %v204 = vadd.f32 %v202, %v203
    %v205 = vrcp.pop 16.0
    %v206 = vmul.f32 %v204, %v205
    %v207 = vsub.f32 %v194, %v206
    %v208 = vsub.f32 %v195, %v206
    %v209 = vmul.f32 %v207, %v207
    %v210 = vmul.f32 %v208, %v208
    %v211 = vsel %vm24, %v209, 0.0
    %v212 = vsel %vm24, %v210, 0.0
    %v213 = vadd.f32 %v211, %v212
    %v214 = vrot.slane %v213, 4
    %v215 = vadd.f32 %v213, %v214
    %v216 = vrot.slane %v215, 2
    %v217 = vadd.f32 %v215, %v216
    %v218 = vrot.slane %v217, 1
    %v219 = vadd.f32 %v217, %v218
    %v220 = vmul.f32 %v219, %v205
    %v221 = vadd.f32 %v220, 1e-05
    %v222 = vrsqrt.pop %v221
    %v223 = vmul.f32 %v207, %v222
    %v224 = vmul.f32 %v208, %v222
    %v225 = vld [vmem:[%s1 + $0x181] ss:$0 sm:$0xff]
    %v226 = vmul.f32 %v223, %v225
    %v227 = vmul.f32 %v224, %v225
    %v228 = vld [vmem:[%s1 + $0x182] ss:$0 sm:$0xff]
    %v229 = vadd.f32 %v226, %v228
    %v230 = vadd.f32 %v227, %v228
    %v231 = vld [vmem:[%s1 + $0x170] sm:$0xf]
    %v232 = vlaneseq
    %v233 = vshrl.u32 %v232, 7
    %v234 = vsub.s32 3, %v233
    %v235 = vrot.slane %v231, %v234
    %v236 = vmul.f32 %v109, %v235
    %v237 = vmul.f32 %v110, %v235
    %vm240 = vcmask 1040384
    %v241 = vrot.slane %v109, 7
    %v242 = vrot.slane %v110, 7
    %v243 = vsel %vm240, %v241, %v242
    %v246 = vsel %vm240, 0.0, %v241
    %v247 = vlaneseq
    %v248 = vshrl.u32 %v247, 7
    %v249 = vsub.s32 2, %v248
    %v250 = vrot.slane %v231, %v249
    %v251 = vmul.f32 %v246, %v250
    %v252 = vmul.f32 %v243, %v250
    %v253 = vadd.f32 %v236, %v251
    %v254 = vadd.f32 %v237, %v252
    %vm255 = vcmask 1041408
    %v256 = vrot.slane %v109, 6
    %v257 = vrot.slane %v110, 6
    %v258 = vsel %vm255, %v256, %v257
    %v261 = vsel %vm255, 0.0, %v256
    %v262 = vlaneseq
    %v263 = vshrl.u32 %v262, 7
    %v264 = vsub.s32 1, %v263
    %v265 = vrot.slane %v231, %v264
    %v266 = vmul.f32 %v261, %v265
    %v267 = vmul.f32 %v258, %v265
    %v268 = vadd.f32 %v253, %v266
    %v269 = vadd.f32 %v254, %v267
    %vm270 = vcmask 1042432
    %v271 = vrot.slane %v109, 5
    %v272 = vrot.slane %v110, 5
    %v273 = vsel %vm270, %v271, %v272
    %v276 = vsel %vm270, 0.0, %v271
    %v277 = vlaneseq
    %v278 = vshrl.u32 %v277, 7
    %v279 = vsub.s32 0, %v278
    %v280 = vrot.slane %v231, %v279
    %v281 = vmul.f32 %v276, %v280
    %v282 = vmul.f32 %v273, %v280
    %v283 = vadd.f32 %v268, %v281
    %v284 = vadd.f32 %v269, %v282
    %v285 = vld [vmem:[%s1 + $0x185] ss:$0 sm:$0xff]
    %v286 = vadd.f32 %v283, %v285
    %v287 = vadd.f32 %v284, %v285
    %v288 = vxor.u32 %v286, 2147483648
    %v289 = vxor.u32 %v287, 2147483648
    %v290 = vmul.f32 %v288, 1.442695
    %v291 = vpow.pop %v290
    %v292 = vmul.f32 %v289, 1.442695
    %v293 = vpow.pop %v292
    %v294 = vadd.f32 %v291, 1.0
    %v295 = vadd.f32 %v293, 1.0
    %v296 = vrcp.pop %v294
    %v297 = vmul.f32 1.0, %v296
    %v298 = vrcp.pop %v295
    %v299 = vmul.f32 1.0, %v298
    %v300 = vmul.f32 %v286, %v297
    %v301 = vmul.f32 %v287, %v299
    %v302 = vld [vmem:[%s1 + $0x40] sm:$0xff]
    %v303 = vld [vmem:[%s1 + $0x50] sm:$0xff]
    %v304 = vld [vmem:[%s1 + $0x60] sm:$0xff]
    %v305 = vld [vmem:[%s1 + $0x70] sm:$0xff]
    %v306 = vld [vmem:[%s1 + $0x80] sm:$0xff]
    %v307 = vld [vmem:[%s1 + $0x90] sm:$0xff]
    %v308 = vld [vmem:[%s1 + $0xa0] sm:$0xff]
    %v309 = vld [vmem:[%s1 + $0xb0] sm:$0xff]
    %v310 = vld [vmem:[%s1 + $0x186] ss:$0 sm:$0xff]
    %vm311 = vcmask 523264
    %v313 = vsel %vm311, %v300, 0
    %v316 = vsel %vm311, %v301, 0
    %318 = vmatprep.subr.mxu0 0.0
    %319 = vmatpush1.msra.mxu0 %v302
    %320 = vmatprep.subr.mxu0 0.0
    %321 = vmatpush1.msra.mxu0 %v303
    %322 = vmatprep.subr.mxu0 0.0
    %323 = vmatpush1.msra.mxu0 %v304
    %324 = vmatprep.subr.mxu0 0.0
    %325 = vmatpush1.msra.mxu0 %v305
    %326 = vmatprep.subr.mxu0 0.0
    %327 = vmatpush1.msra.mxu0 %v306
    %328 = vmatprep.subr.mxu0 0.0
    %329 = vmatpush1.msra.mxu0 %v307
    %330 = vmatprep.subr.mxu0 0.0
    %331 = vmatpush1.msra.mxu0 %v308
    %332 = vmatprep.subr.mxu0 0.0
    %333 = vmatpush1.msra.mxu0 %v309
    %334 = vmatprep.subr.mxu0 0.0
    %335 = vmatpush1.msra.mxu0 0.0
    %336 = vmatprep.subr.mxu0 0.0
    %337 = vmatpush1.msra.mxu0 0.0
    %338 = vmatprep.subr.mxu0 0.0
    %339 = vmatpush1.msra.mxu0 0.0
    %340 = vmatprep.subr.mxu0 0.0
    %341 = vmatpush1.msra.mxu0 0.0
    %342 = vmatprep.subr.mxu0 0.0
    %343 = vmatpush1.msra.mxu0 0.0
    %344 = vmatprep.subr.mxu0 0.0
    %345 = vmatpush1.msra.mxu0 0.0
    %346 = vmatprep.subr.mxu0 0.0
    %347 = vmatpush1.msra.mxu0 0.0
    %348 = vmatprep.subr.mxu0 0.0
    %349 = vmatpush1.msra.mxu0 0.0
    %350 = vmatprep.subr.mxu0 0.0
    %351 = vmatpush1.msra.mxu0 0.0
    %352 = vmatprep.subr.mxu0 0.0
    %353 = vmatpush1.msra.mxu0 0.0
    %354 = vmatprep.subr.mxu0 0.0
    %355 = vmatpush1.msra.mxu0 0.0
    %356 = vmatprep.subr.mxu0 0.0
    %357 = vmatpush1.msra.mxu0 0.0
    %358 = vmatprep.subr.mxu0 0.0
    %359 = vmatpush1.msra.mxu0 0.0
    %360 = vmatprep.subr.mxu0 0.0
    %361 = vmatpush1.msra.mxu0 0.0
    %362 = vmatprep.subr.mxu0 0.0
    %363 = vmatpush1.msra.mxu0 0.0
    %364 = vmatprep.subr.mxu0 0.0
    %365 = vmatpush1.msra.mxu0 0.0
    %366 = vmatprep.subr.mxu0 0.0
    %367 = vmatpush1.msra.mxu0 0.0
    %368 = vmatprep.subr.mxu0 0.0
    %369 = vmatpush1.msra.mxu0 0.0
    %370 = vmatprep.subr.mxu0 0.0
    %371 = vmatpush1.msra.mxu0 0.0
    %372 = vmatprep.subr.mxu0 0.0
    %373 = vmatpush1.msra.mxu0 0.0
    %374 = vmatprep.subr.mxu0 0.0
    %375 = vmatpush1.msra.mxu0 0.0
    %376 = vmatprep.subr.mxu0 0.0
    %377 = vmatpush1.msra.mxu0 0.0
    %378 = vmatprep.subr.mxu0 0.0
    %379 = vmatpush1.msra.mxu0 0.0
    %380 = vmatprep.subr.mxu0 0.0
    %381 = vmatpush1.msra.mxu0 0.0
    %382 = vmatprep.mubr.f32.mxu0 0.0
    %383 = vmatmul.mubr.f32.gmra.mrb[0].mxu0 %v313
    %v384 = vpop.f32.mrb[0].mxu0
    %v385 = vadd.f32 %v310, %v384
    %v386 = vpop.f32.mrb[0].mxu0
    %387 = vmatprep.mubr.f32.mxu0 0.0
    %388 = vmatmul.mubr.f32.gmra.mrb[0].mxu0 %v316
    %v389 = vpop.f32.mrb[0].mxu0
    %v390 = vadd.f32 %v310, %v389
    %v391 = vpop.f32.mrb[0].mxu0
    %392 = vdwg.mxu0
    %v393 = vmax.f32 %v385, 0.0
    %v394 = vmax.f32 %v390, 0.0
    %vm395 = vcmp.ne.f32.partialorder %v385, %v385
    %vm396 = vcmp.ne.f32.partialorder %v390, %v390
    %v397 = vadd.f32 %v385, 0.0
    %v398 = vadd.f32 %v390, 0.0
    %v399 = vand.u32 2147483647, %v385
    %v400 = vand.u32 2147483647, %v390
    %v401 = vsub.f32 0.0, %v399
    %v402 = vsub.f32 0.0, %v400
    %v403 = vmul.f32 %v401, 1.442695
    %v404 = vpow.pop %v403
    %v405 = vmul.f32 %v402, 1.442695
    %v406 = vpow.pop %v405
    %v407 = vadd.f32 %v404, 1.0
    %v408 = vlog2.pop %v407
    %v409 = vmul.f32 %v408, 0.6931472
    %v410 = vmul.f32 -0.5, %v404
    %v411 = vadd.f32 %v410, 1.0
    %v412 = vmul.f32 %v411, %v404
    %v413 = vand.u32 2147483647, %v404
    %vm414 = vcmp.lt.f32.partialorder %v413, 0.0004427343
    %v415 = vsel %vm414, %v412, %v409
    %v416 = vadd.f32 %v406, 1.0
    %v417 = vlog2.pop %v416
    %v418 = vmul.f32 %v417, 0.6931472
    %v419 = vmul.f32 -0.5, %v406
    %v420 = vadd.f32 %v419, 1.0
    %v421 = vmul.f32 %v420, %v406
    %v422 = vand.u32 2147483647, %v406
    %vm423 = vcmp.lt.f32.partialorder %v422, 0.0004427343
    %v424 = vsel %vm423, %v421, %v418
    %v425 = vadd.f32 %v393, %v415
    %v426 = vadd.f32 %v394, %v424
    %v427 = vsel %vm395, %v397, %v425
    %v428 = vsel %vm396, %v398, %v426
    %v429 = vld [vmem:[%s1 + $0x140] sm:$0xff]
    %v430 = vld [vmem:[%s1 + $0x150] sm:$0xff]
    %v432 = vsel %vm311, %v429, 0
    %v435 = vsel %vm311, %v430, 0
    %437 = vmatprep.subr.mxu0 0.0
    %438 = vmatpush1.xpose.msra.mxu0 %v313
    %439 = vmatprep.subr.mxu0 0.0
    %440 = vmatpush1.xpose.msra.mxu0 %v316
    %441 = vmatprep.subr.mxu0 0.0
    %442 = vmatpush1.xpose.msra.mxu0 0.0
    %443 = vmatprep.subr.mxu0 0.0
    %444 = vmatpush1.xpose.msra.mxu0 0.0
    %445 = vmatprep.subr.mxu0 0.0
    %446 = vmatpush1.xpose.msra.mxu0 0.0
    %447 = vmatprep.subr.mxu0 0.0
    %448 = vmatpush1.xpose.msra.mxu0 0.0
    %449 = vmatprep.subr.mxu0 0.0
    %450 = vmatpush1.xpose.msra.mxu0 0.0
    %451 = vmatprep.subr.mxu0 0.0
    %452 = vmatpush1.xpose.msra.mxu0 0.0
    %453 = vmatprep.subr.mxu0 0.0
    %454 = vmatpush1.xpose.msra.mxu0 0.0
    %455 = vmatprep.subr.mxu0 0.0
    %456 = vmatpush1.xpose.msra.mxu0 0.0
    %457 = vmatprep.subr.mxu0 0.0
    %458 = vmatpush1.xpose.msra.mxu0 0.0
    %459 = vmatprep.subr.mxu0 0.0
    %460 = vmatpush1.xpose.msra.mxu0 0.0
    %461 = vmatprep.subr.mxu0 0.0
    %462 = vmatpush1.xpose.msra.mxu0 0.0
    %463 = vmatprep.subr.mxu0 0.0
    %464 = vmatpush1.xpose.msra.mxu0 0.0
    %465 = vmatprep.subr.mxu0 0.0
    %466 = vmatpush1.xpose.msra.mxu0 0.0
    %467 = vmatprep.subr.mxu0 0.0
    %468 = vmatpush1.xpose.msra.mxu0 0.0
    %469 = vmatprep.subr.mxu0 0.0
    %470 = vmatpush1.xpose.msra.mxu0 0.0
    %471 = vmatprep.subr.mxu0 0.0
    %472 = vmatpush1.xpose.msra.mxu0 0.0
    %473 = vmatprep.subr.mxu0 0.0
    %474 = vmatpush1.xpose.msra.mxu0 0.0
    %475 = vmatprep.subr.mxu0 0.0
    %476 = vmatpush1.xpose.msra.mxu0 0.0
    %477 = vmatprep.subr.mxu0 0.0
    %478 = vmatpush1.xpose.msra.mxu0 0.0
    %479 = vmatprep.subr.mxu0 0.0
    %480 = vmatpush1.xpose.msra.mxu0 0.0
    %481 = vmatprep.subr.mxu0 0.0
    %482 = vmatpush1.xpose.msra.mxu0 0.0
    %483 = vmatprep.subr.mxu0 0.0
    %484 = vmatpush1.xpose.msra.mxu0 0.0
    %485 = vmatprep.subr.mxu0 0.0
    %486 = vmatpush1.xpose.msra.mxu0 0.0
    %487 = vmatprep.subr.mxu0 0.0
    %488 = vmatpush1.xpose.msra.mxu0 0.0
    %489 = vmatprep.subr.mxu0 0.0
    %490 = vmatpush1.xpose.msra.mxu0 0.0
    %491 = vmatprep.subr.mxu0 0.0
    %492 = vmatpush1.xpose.msra.mxu0 0.0
    %493 = vmatprep.subr.mxu0 0.0
    %494 = vmatpush1.xpose.msra.mxu0 0.0
    %495 = vmatprep.subr.mxu0 0.0
    %496 = vmatpush1.xpose.msra.mxu0 0.0
    %497 = vmatprep.subr.mxu0 0.0
    %498 = vmatpush1.xpose.msra.mxu0 0.0
    %499 = vmatprep.subr.mxu0 0.0
    %500 = vmatpush1.xpose.msra.mxu0 0.0
    %501 = vmatprep.mubr.f32.mxu0 0.0
    %502 = vmatmul.mubr.f32.gmra.mrb[0].mxu0 %v432
    %v503 = vpop.f32.mrb[0].mxu0
    %v504 = vadd.f32 0.0, %v503
    %v505 = vpop.f32.mrb[0].mxu0
    %506 = vmatprep.mubr.f32.mxu0 0.0
    %507 = vmatmul.mubr.f32.gmra.mrb[0].mxu0 %v435
    %v508 = vpop.f32.mrb[0].mxu0
    %v509 = vadd.f32 0.0, %v508
    %v510 = vpop.f32.mrb[0].mxu0
    %511 = vdwg.mxu0
    %v512 = vld [vmem:[%s1 + $0x160] sm:$0xff]
    %v513 = vmul.f32 %v512, 1.442695
    %v514 = vpow.pop %v513
    %v515 = vsub.f32 0.0, %v514
    %v516 = vmul.f32 %v427, %v300
    %v517 = vmul.f32 %v428, %v301
    %v518 = vlaneseq
    %v519 = vshrl.u32 %v518, 7
    %v520 = vadd.s32 %v519, 8
    %v521 = vlaneseq
    %v522 = vshrl.u32 %v521, 7
    %v523 = vsub.s32 0, %v522
    %v524 = vrot.slane %v427, %v523
    %v525 = vmul.f32 %v524, %v515
    %v526 = vmul.f32 %v525, 1.442695
    %v527 = vpow.pop %v526
    %529 = vset.pattern.permute.xlu0 0
    %530 = vperm.xlu0 %529, %v504
    %v531 = vpop.permute.xlu0 %530
    %v533 = vlaneseq
    %v534 = vshrl.u32 %v533, 7
    %v535 = vsub.s32 0, %v534
    %v536 = vrot.slane %v516, %v535
    %v537 = vmul.f32 %v531, %v536
    %v538 = vmul.f32 %v527, 0.0
    %v539 = vadd.f32 %v538, %v537
    %541 = vset.pattern.permute.xlu0 0
    %542 = vperm.xlu0 %541, %v509
    %v543 = vpop.permute.xlu0 %542
    %v545 = vmul.f32 %v539, %v543
    %v546 = vsel %vm311, %v545, 0.0
    %v547 = vrot.slane %v546, 4
    %v548 = vadd.f32 %v546, %v547
    %v549 = vrot.slane %v548, 2
    %v550 = vadd.f32 %v548, %v549
    %v551 = vrot.slane %v550, 1
    %v552 = vadd.f32 %v550, %v551
    %vm553 = vcmp.eq.s32.totalorder %v519, 0
    %vm554 = vcmp.eq.s32.totalorder %v520, 0
    %v555 = vsel %vm553, 1, 0
    %v556 = vsel %vm554, 1, 0
    %v557 = vcvt.s32.f32 %v555
    %v558 = vcvt.s32.f32 %v556
    %v559 = vmul.f32 %v557, %v552
    %v560 = vmul.f32 %v558, %v552
    %v561 = vadd.f32 %v559, 0.0
    %v562 = vadd.f32 %v560, 0.0
    %v563 = vlaneseq
    %v564 = vshrl.u32 %v563, 7
    %v565 = vsub.s32 1, %v564
    %v566 = vrot.slane %v427, %v565
    %v567 = vmul.f32 %v566, %v515
    %v568 = vmul.f32 %v567, 1.442695
    %v569 = vpow.pop %v568
    %570 = vset.pattern.permute.xlu0 1
    %571 = vperm.xlu0 %570, %v504
    %v572 = vpop.permute.xlu0 %571
    %v574 = vlaneseq
    %v575 = vshrl.u32 %v574, 7
    %v576 = vsub.s32 1, %v575
    %v577 = vrot.slane %v516, %v576
    %v578 = vmul.f32 %v572, %v577
    %v579 = vmul.f32 %v569, %v539
    %v580 = vadd.f32 %v579, %v578
    %581 = vset.pattern.permute.xlu0 1
    %582 = vperm.xlu0 %581, %v509
    %v583 = vpop.permute.xlu0 %582
    %v585 = vmul.f32 %v580, %v583
    %v586 = vsel %vm311, %v585, 0.0
    %v587 = vrot.slane %v586, 4
    %v588 = vadd.f32 %v586, %v587
    %v589 = vrot.slane %v588, 2
    %v590 = vadd.f32 %v588, %v589
    %v591 = vrot.slane %v590, 1
    %v592 = vadd.f32 %v590, %v591
    %vm593 = vcmp.eq.s32.totalorder %v519, 1
    %vm594 = vcmp.eq.s32.totalorder %v520, 1
    %v595 = vsel %vm593, 1, 0
    %v596 = vsel %vm594, 1, 0
    %v597 = vcvt.s32.f32 %v595
    %v598 = vcvt.s32.f32 %v596
    %v599 = vmul.f32 %v597, %v592
    %v600 = vmul.f32 %v598, %v592
    %v601 = vadd.f32 %v561, %v599
    %v602 = vadd.f32 %v562, %v600
    %v603 = vlaneseq
    %v604 = vshrl.u32 %v603, 7
    %v605 = vsub.s32 2, %v604
    %v606 = vrot.slane %v427, %v605
    %v607 = vmul.f32 %v606, %v515
    %v608 = vmul.f32 %v607, 1.442695
    %v609 = vpow.pop %v608
    %610 = vset.pattern.permute.xlu0 2
    %611 = vperm.xlu0 %610, %v504
    %v612 = vpop.permute.xlu0 %611
    %v614 = vlaneseq
    %v615 = vshrl.u32 %v614, 7
    %v616 = vsub.s32 2, %v615
    %v617 = vrot.slane %v516, %v616
    %v618 = vmul.f32 %v612, %v617
    %v619 = vmul.f32 %v609, %v580
    %v620 = vadd.f32 %v619, %v618
    %621 = vset.pattern.permute.xlu0 2
    %622 = vperm.xlu0 %621, %v509
    %v623 = vpop.permute.xlu0 %622
    %v625 = vmul.f32 %v620, %v623
    %v626 = vsel %vm311, %v625, 0.0
    %v627 = vrot.slane %v626, 4
    %v628 = vadd.f32 %v626, %v627
    %v629 = vrot.slane %v628, 2
    %v630 = vadd.f32 %v628, %v629
    %v631 = vrot.slane %v630, 1
    %v632 = vadd.f32 %v630, %v631
    %vm633 = vcmp.eq.s32.totalorder %v519, 2
    %vm634 = vcmp.eq.s32.totalorder %v520, 2
    %v635 = vsel %vm633, 1, 0
    %v636 = vsel %vm634, 1, 0
    %v637 = vcvt.s32.f32 %v635
    %v638 = vcvt.s32.f32 %v636
    %v639 = vmul.f32 %v637, %v632
    %v640 = vmul.f32 %v638, %v632
    %v641 = vadd.f32 %v601, %v639
    %v642 = vadd.f32 %v602, %v640
    %v643 = vlaneseq
    %v644 = vshrl.u32 %v643, 7
    %v645 = vsub.s32 3, %v644
    %v646 = vrot.slane %v427, %v645
    %v647 = vmul.f32 %v646, %v515
    %v648 = vmul.f32 %v647, 1.442695
    %v649 = vpow.pop %v648
    %650 = vset.pattern.permute.xlu0 3
    %651 = vperm.xlu0 %650, %v504
    %v652 = vpop.permute.xlu0 %651
    %v654 = vlaneseq
    %v655 = vshrl.u32 %v654, 7
    %v656 = vsub.s32 3, %v655
    %v657 = vrot.slane %v516, %v656
    %v658 = vmul.f32 %v652, %v657
    %v659 = vmul.f32 %v649, %v620
    %v660 = vadd.f32 %v659, %v658
    %661 = vset.pattern.permute.xlu0 3
    %662 = vperm.xlu0 %661, %v509
    %v663 = vpop.permute.xlu0 %662
    %v665 = vmul.f32 %v660, %v663
    %v666 = vsel %vm311, %v665, 0.0
    %v667 = vrot.slane %v666, 4
    %v668 = vadd.f32 %v666, %v667
    %v669 = vrot.slane %v668, 2
    %v670 = vadd.f32 %v668, %v669
    %v671 = vrot.slane %v670, 1
    %v672 = vadd.f32 %v670, %v671
    %vm673 = vcmp.eq.s32.totalorder %v519, 3
    %vm674 = vcmp.eq.s32.totalorder %v520, 3
    %v675 = vsel %vm673, 1, 0
    %v676 = vsel %vm674, 1, 0
    %v677 = vcvt.s32.f32 %v675
    %v678 = vcvt.s32.f32 %v676
    %v679 = vmul.f32 %v677, %v672
    %v680 = vmul.f32 %v678, %v672
    %v681 = vadd.f32 %v641, %v679
    %v682 = vadd.f32 %v642, %v680
    %v683 = vlaneseq
    %v684 = vshrl.u32 %v683, 7
    %v685 = vsub.s32 4, %v684
    %v686 = vrot.slane %v427, %v685
    %v687 = vmul.f32 %v686, %v515
    %v688 = vmul.f32 %v687, 1.442695
    %v689 = vpow.pop %v688
    %690 = vset.pattern.permute.xlu0 4
    %691 = vperm.xlu0 %690, %v504
    %v692 = vpop.permute.xlu0 %691
    %v694 = vlaneseq
    %v695 = vshrl.u32 %v694, 7
    %v696 = vsub.s32 4, %v695
    %v697 = vrot.slane %v516, %v696
    %v698 = vmul.f32 %v692, %v697
    %v699 = vmul.f32 %v689, %v660
    %v700 = vadd.f32 %v699, %v698
    %701 = vset.pattern.permute.xlu0 4
    %702 = vperm.xlu0 %701, %v509
    %v703 = vpop.permute.xlu0 %702
    %v705 = vmul.f32 %v700, %v703
    %v706 = vsel %vm311, %v705, 0.0
    %v707 = vrot.slane %v706, 4
    %v708 = vadd.f32 %v706, %v707
    %v709 = vrot.slane %v708, 2
    %v710 = vadd.f32 %v708, %v709
    %v711 = vrot.slane %v710, 1
    %v712 = vadd.f32 %v710, %v711
    %vm713 = vcmp.eq.s32.totalorder %v519, 4
    %vm714 = vcmp.eq.s32.totalorder %v520, 4
    %v715 = vsel %vm713, 1, 0
    %v716 = vsel %vm714, 1, 0
    %v717 = vcvt.s32.f32 %v715
    %v718 = vcvt.s32.f32 %v716
    %v719 = vmul.f32 %v717, %v712
    %v720 = vmul.f32 %v718, %v712
    %v721 = vadd.f32 %v681, %v719
    %v722 = vadd.f32 %v682, %v720
    %v723 = vlaneseq
    %v724 = vshrl.u32 %v723, 7
    %v725 = vsub.s32 5, %v724
    %v726 = vrot.slane %v427, %v725
    %v727 = vmul.f32 %v726, %v515
    %v728 = vmul.f32 %v727, 1.442695
    %v729 = vpow.pop %v728
    %730 = vset.pattern.permute.xlu0 5
    %731 = vperm.xlu0 %730, %v504
    %v732 = vpop.permute.xlu0 %731
    %v734 = vlaneseq
    %v735 = vshrl.u32 %v734, 7
    %v736 = vsub.s32 5, %v735
    %v737 = vrot.slane %v516, %v736
    %v738 = vmul.f32 %v732, %v737
    %v739 = vmul.f32 %v729, %v700
    %v740 = vadd.f32 %v739, %v738
    %741 = vset.pattern.permute.xlu0 5
    %742 = vperm.xlu0 %741, %v509
    %v743 = vpop.permute.xlu0 %742
    %v745 = vmul.f32 %v740, %v743
    %v746 = vsel %vm311, %v745, 0.0
    %v747 = vrot.slane %v746, 4
    %v748 = vadd.f32 %v746, %v747
    %v749 = vrot.slane %v748, 2
    %v750 = vadd.f32 %v748, %v749
    %v751 = vrot.slane %v750, 1
    %v752 = vadd.f32 %v750, %v751
    %vm753 = vcmp.eq.s32.totalorder %v519, 5
    %vm754 = vcmp.eq.s32.totalorder %v520, 5
    %v755 = vsel %vm753, 1, 0
    %v756 = vsel %vm754, 1, 0
    %v757 = vcvt.s32.f32 %v755
    %v758 = vcvt.s32.f32 %v756
    %v759 = vmul.f32 %v757, %v752
    %v760 = vmul.f32 %v758, %v752
    %v761 = vadd.f32 %v721, %v759
    %v762 = vadd.f32 %v722, %v760
    %v763 = vlaneseq
    %v764 = vshrl.u32 %v763, 7
    %v765 = vsub.s32 6, %v764
    %v766 = vrot.slane %v427, %v765
    %v767 = vmul.f32 %v766, %v515
    %v768 = vmul.f32 %v767, 1.442695
    %v769 = vpow.pop %v768
    %770 = vset.pattern.permute.xlu0 6
    %771 = vperm.xlu0 %770, %v504
    %v772 = vpop.permute.xlu0 %771
    %v774 = vlaneseq
    %v775 = vshrl.u32 %v774, 7
    %v776 = vsub.s32 6, %v775
    %v777 = vrot.slane %v516, %v776
    %v778 = vmul.f32 %v772, %v777
    %v779 = vmul.f32 %v769, %v740
    %v780 = vadd.f32 %v779, %v778
    %781 = vset.pattern.permute.xlu0 6
    %782 = vperm.xlu0 %781, %v509
    %v783 = vpop.permute.xlu0 %782
    %v785 = vmul.f32 %v780, %v783
    %v786 = vsel %vm311, %v785, 0.0
    %v787 = vrot.slane %v786, 4
    %v788 = vadd.f32 %v786, %v787
    %v789 = vrot.slane %v788, 2
    %v790 = vadd.f32 %v788, %v789
    %v791 = vrot.slane %v790, 1
    %v792 = vadd.f32 %v790, %v791
    %vm793 = vcmp.eq.s32.totalorder %v519, 6
    %vm794 = vcmp.eq.s32.totalorder %v520, 6
    %v795 = vsel %vm793, 1, 0
    %v796 = vsel %vm794, 1, 0
    %v797 = vcvt.s32.f32 %v795
    %v798 = vcvt.s32.f32 %v796
    %v799 = vmul.f32 %v797, %v792
    %v800 = vmul.f32 %v798, %v792
    %v801 = vadd.f32 %v761, %v799
    %v802 = vadd.f32 %v762, %v800
    %v803 = vlaneseq
    %v804 = vshrl.u32 %v803, 7
    %v805 = vsub.s32 7, %v804
    %v806 = vrot.slane %v427, %v805
    %v807 = vmul.f32 %v806, %v515
    %v808 = vmul.f32 %v807, 1.442695
    %v809 = vpow.pop %v808
    %810 = vset.pattern.permute.xlu0 7
    %811 = vperm.xlu0 %810, %v504
    %v812 = vpop.permute.xlu0 %811
    %v814 = vlaneseq
    %v815 = vshrl.u32 %v814, 7
    %v816 = vsub.s32 7, %v815
    %v817 = vrot.slane %v516, %v816
    %v818 = vmul.f32 %v812, %v817
    %v819 = vmul.f32 %v809, %v780
    %v820 = vadd.f32 %v819, %v818
    %821 = vset.pattern.permute.xlu0 7
    %822 = vperm.xlu0 %821, %v509
    %v823 = vpop.permute.xlu0 %822
    %v825 = vmul.f32 %v820, %v823
    %v826 = vsel %vm311, %v825, 0.0
    %v827 = vrot.slane %v826, 4
    %v828 = vadd.f32 %v826, %v827
    %v829 = vrot.slane %v828, 2
    %v830 = vadd.f32 %v828, %v829
    %v831 = vrot.slane %v830, 1
    %v832 = vadd.f32 %v830, %v831
    %vm833 = vcmp.eq.s32.totalorder %v519, 7
    %vm834 = vcmp.eq.s32.totalorder %v520, 7
    %v835 = vsel %vm833, 1, 0
    %v836 = vsel %vm834, 1, 0
    %v837 = vcvt.s32.f32 %v835
    %v838 = vcvt.s32.f32 %v836
    %v839 = vmul.f32 %v837, %v832
    %v840 = vmul.f32 %v838, %v832
    %v841 = vadd.f32 %v801, %v839
    %v842 = vadd.f32 %v802, %v840
    %v843 = vlaneseq
    %v844 = vshrl.u32 %v843, 7
    %v845 = vsub.s32 0, %v844
    %v846 = vrot.slane %v428, %v845
    %v847 = vmul.f32 %v846, %v515
    %v848 = vmul.f32 %v847, 1.442695
    %v849 = vpow.pop %v848
    %850 = vset.pattern.permute.xlu0 8
    %851 = vperm.xlu0 %850, %v504
    %v852 = vpop.permute.xlu0 %851
    %v854 = vlaneseq
    %v855 = vshrl.u32 %v854, 7
    %v856 = vsub.s32 0, %v855
    %v857 = vrot.slane %v517, %v856
    %v858 = vmul.f32 %v852, %v857
    %v859 = vmul.f32 %v849, %v820
    %v860 = vadd.f32 %v859, %v858
    %861 = vset.pattern.permute.xlu0 8
    %862 = vperm.xlu0 %861, %v509
    %v863 = vpop.permute.xlu0 %862
    %v865 = vmul.f32 %v860, %v863
    %v866 = vsel %vm311, %v865, 0.0
    %v867 = vrot.slane %v866, 4
    %v868 = vadd.f32 %v866, %v867
    %v869 = vrot.slane %v868, 2
    %v870 = vadd.f32 %v868, %v869
    %v871 = vrot.slane %v870, 1
    %v872 = vadd.f32 %v870, %v871
    %vm873 = vcmp.eq.s32.totalorder %v519, 8
    %vm874 = vcmp.eq.s32.totalorder %v520, 8
    %v875 = vsel %vm873, 1, 0
    %v876 = vsel %vm874, 1, 0
    %v877 = vcvt.s32.f32 %v875
    %v878 = vcvt.s32.f32 %v876
    %v879 = vmul.f32 %v877, %v872
    %v880 = vmul.f32 %v878, %v872
    %v881 = vadd.f32 %v841, %v879
    %v882 = vadd.f32 %v842, %v880
    %v883 = vlaneseq
    %v884 = vshrl.u32 %v883, 7
    %v885 = vsub.s32 1, %v884
    %v886 = vrot.slane %v428, %v885
    %v887 = vmul.f32 %v886, %v515
    %v888 = vmul.f32 %v887, 1.442695
    %v889 = vpow.pop %v888
    %890 = vset.pattern.permute.xlu0 9
    %891 = vperm.xlu0 %890, %v504
    %v892 = vpop.permute.xlu0 %891
    %v894 = vlaneseq
    %v895 = vshrl.u32 %v894, 7
    %v896 = vsub.s32 1, %v895
    %v897 = vrot.slane %v517, %v896
    %v898 = vmul.f32 %v892, %v897
    %v899 = vmul.f32 %v889, %v860
    %v900 = vadd.f32 %v899, %v898
    %901 = vset.pattern.permute.xlu0 9
    %902 = vperm.xlu0 %901, %v509
    %v903 = vpop.permute.xlu0 %902
    %v905 = vmul.f32 %v900, %v903
    %v906 = vsel %vm311, %v905, 0.0
    %v907 = vrot.slane %v906, 4
    %v908 = vadd.f32 %v906, %v907
    %v909 = vrot.slane %v908, 2
    %v910 = vadd.f32 %v908, %v909
    %v911 = vrot.slane %v910, 1
    %v912 = vadd.f32 %v910, %v911
    %vm913 = vcmp.eq.s32.totalorder %v519, 9
    %vm914 = vcmp.eq.s32.totalorder %v520, 9
    %v915 = vsel %vm913, 1, 0
    %v916 = vsel %vm914, 1, 0
    %v917 = vcvt.s32.f32 %v915
    %v918 = vcvt.s32.f32 %v916
    %v919 = vmul.f32 %v917, %v912
    %v920 = vmul.f32 %v918, %v912
    %v921 = vadd.f32 %v881, %v919
    %v922 = vadd.f32 %v882, %v920
    %v923 = vlaneseq
    %v924 = vshrl.u32 %v923, 7
    %v925 = vsub.s32 2, %v924
    %v926 = vrot.slane %v428, %v925
    %v927 = vmul.f32 %v926, %v515
    %v928 = vmul.f32 %v927, 1.442695
    %v929 = vpow.pop %v928
    %930 = vset.pattern.permute.xlu0 10
    %931 = vperm.xlu0 %930, %v504
    %v932 = vpop.permute.xlu0 %931
    %v934 = vlaneseq
    %v935 = vshrl.u32 %v934, 7
    %v936 = vsub.s32 2, %v935
    %v937 = vrot.slane %v517, %v936
    %v938 = vmul.f32 %v932, %v937
    %v939 = vmul.f32 %v929, %v900
    %v940 = vadd.f32 %v939, %v938
    %941 = vset.pattern.permute.xlu0 10
    %942 = vperm.xlu0 %941, %v509
    %v943 = vpop.permute.xlu0 %942
    %v945 = vmul.f32 %v940, %v943
    %v946 = vsel %vm311, %v945, 0.0
    %v947 = vrot.slane %v946, 4
    %v948 = vadd.f32 %v946, %v947
    %v949 = vrot.slane %v948, 2
    %v950 = vadd.f32 %v948, %v949
    %v951 = vrot.slane %v950, 1
    %v952 = vadd.f32 %v950, %v951
    %vm953 = vcmp.eq.s32.totalorder %v519, 10
    %vm954 = vcmp.eq.s32.totalorder %v520, 10
    %v955 = vsel %vm953, 1, 0
    %v956 = vsel %vm954, 1, 0
    %v957 = vcvt.s32.f32 %v955
    %v958 = vcvt.s32.f32 %v956
    %v959 = vmul.f32 %v957, %v952
    %v960 = vmul.f32 %v958, %v952
    %v961 = vadd.f32 %v921, %v959
    %v962 = vadd.f32 %v922, %v960
    %v963 = vlaneseq
    %v964 = vshrl.u32 %v963, 7
    %v965 = vsub.s32 3, %v964
    %v966 = vrot.slane %v428, %v965
    %v967 = vmul.f32 %v966, %v515
    %v968 = vmul.f32 %v967, 1.442695
    %v969 = vpow.pop %v968
    %970 = vset.pattern.permute.xlu0 11
    %971 = vperm.xlu0 %970, %v504
    %v972 = vpop.permute.xlu0 %971
    %v974 = vlaneseq
    %v975 = vshrl.u32 %v974, 7
    %v976 = vsub.s32 3, %v975
    %v977 = vrot.slane %v517, %v976
    %v978 = vmul.f32 %v972, %v977
    %v979 = vmul.f32 %v969, %v940
    %v980 = vadd.f32 %v979, %v978
    %981 = vset.pattern.permute.xlu0 11
    %982 = vperm.xlu0 %981, %v509
    %v983 = vpop.permute.xlu0 %982
    %v985 = vmul.f32 %v980, %v983
    %v986 = vsel %vm311, %v985, 0.0
    %v987 = vrot.slane %v986, 4
    %v988 = vadd.f32 %v986, %v987
    %v989 = vrot.slane %v988, 2
    %v990 = vadd.f32 %v988, %v989
    %v991 = vrot.slane %v990, 1
    %v992 = vadd.f32 %v990, %v991
    %vm993 = vcmp.eq.s32.totalorder %v519, 11
    %vm994 = vcmp.eq.s32.totalorder %v520, 11
    %v995 = vsel %vm993, 1, 0
    %v996 = vsel %vm994, 1, 0
    %v997 = vcvt.s32.f32 %v995
    %v998 = vcvt.s32.f32 %v996
    %v999 = vmul.f32 %v997, %v992
    %v1000 = vmul.f32 %v998, %v992
    %v1001 = vadd.f32 %v961, %v999
    %v1002 = vadd.f32 %v962, %v1000
    %v1003 = vlaneseq
    %v1004 = vshrl.u32 %v1003, 7
    %v1005 = vsub.s32 4, %v1004
    %v1006 = vrot.slane %v428, %v1005
    %v1007 = vmul.f32 %v1006, %v515
    %v1008 = vmul.f32 %v1007, 1.442695
    %v1009 = vpow.pop %v1008
    %1010 = vset.pattern.permute.xlu0 12
    %1011 = vperm.xlu0 %1010, %v504
    %v1012 = vpop.permute.xlu0 %1011
    %v1014 = vlaneseq
    %v1015 = vshrl.u32 %v1014, 7
    %v1016 = vsub.s32 4, %v1015
    %v1017 = vrot.slane %v517, %v1016
    %v1018 = vmul.f32 %v1012, %v1017
    %v1019 = vmul.f32 %v1009, %v980
    %v1020 = vadd.f32 %v1019, %v1018
    %1021 = vset.pattern.permute.xlu0 12
    %1022 = vperm.xlu0 %1021, %v509
    %v1023 = vpop.permute.xlu0 %1022
    %v1025 = vmul.f32 %v1020, %v1023
    %v1026 = vsel %vm311, %v1025, 0.0
    %v1027 = vrot.slane %v1026, 4
    %v1028 = vadd.f32 %v1026, %v1027
    %v1029 = vrot.slane %v1028, 2
    %v1030 = vadd.f32 %v1028, %v1029
    %v1031 = vrot.slane %v1030, 1
    %v1032 = vadd.f32 %v1030, %v1031
    %vm1033 = vcmp.eq.s32.totalorder %v519, 12
    %vm1034 = vcmp.eq.s32.totalorder %v520, 12
    %v1035 = vsel %vm1033, 1, 0
    %v1036 = vsel %vm1034, 1, 0
    %v1037 = vcvt.s32.f32 %v1035
    %v1038 = vcvt.s32.f32 %v1036
    %v1039 = vmul.f32 %v1037, %v1032
    %v1040 = vmul.f32 %v1038, %v1032
    %v1041 = vadd.f32 %v1001, %v1039
    %v1042 = vadd.f32 %v1002, %v1040
    %v1043 = vlaneseq
    %v1044 = vshrl.u32 %v1043, 7
    %v1045 = vsub.s32 5, %v1044
    %v1046 = vrot.slane %v428, %v1045
    %v1047 = vmul.f32 %v1046, %v515
    %v1048 = vmul.f32 %v1047, 1.442695
    %v1049 = vpow.pop %v1048
    %1050 = vset.pattern.permute.xlu0 13
    %1051 = vperm.xlu0 %1050, %v504
    %v1052 = vpop.permute.xlu0 %1051
    %v1054 = vlaneseq
    %v1055 = vshrl.u32 %v1054, 7
    %v1056 = vsub.s32 5, %v1055
    %v1057 = vrot.slane %v517, %v1056
    %v1058 = vmul.f32 %v1052, %v1057
    %v1059 = vmul.f32 %v1049, %v1020
    %v1060 = vadd.f32 %v1059, %v1058
    %1061 = vset.pattern.permute.xlu0 13
    %1062 = vperm.xlu0 %1061, %v509
    %v1063 = vpop.permute.xlu0 %1062
    %v1065 = vmul.f32 %v1060, %v1063
    %v1066 = vsel %vm311, %v1065, 0.0
    %v1067 = vrot.slane %v1066, 4
    %v1068 = vadd.f32 %v1066, %v1067
    %v1069 = vrot.slane %v1068, 2
    %v1070 = vadd.f32 %v1068, %v1069
    %v1071 = vrot.slane %v1070, 1
    %v1072 = vadd.f32 %v1070, %v1071
    %vm1073 = vcmp.eq.s32.totalorder %v519, 13
    %vm1074 = vcmp.eq.s32.totalorder %v520, 13
    %v1075 = vsel %vm1073, 1, 0
    %v1076 = vsel %vm1074, 1, 0
    %v1077 = vcvt.s32.f32 %v1075
    %v1078 = vcvt.s32.f32 %v1076
    %v1079 = vmul.f32 %v1077, %v1072
    %v1080 = vmul.f32 %v1078, %v1072
    %v1081 = vadd.f32 %v1041, %v1079
    %v1082 = vadd.f32 %v1042, %v1080
    %v1083 = vlaneseq
    %v1084 = vshrl.u32 %v1083, 7
    %v1085 = vsub.s32 6, %v1084
    %v1086 = vrot.slane %v428, %v1085
    %v1087 = vmul.f32 %v1086, %v515
    %v1088 = vmul.f32 %v1087, 1.442695
    %v1089 = vpow.pop %v1088
    %1090 = vset.pattern.permute.xlu0 14
    %1091 = vperm.xlu0 %1090, %v504
    %v1092 = vpop.permute.xlu0 %1091
    %v1094 = vlaneseq
    %v1095 = vshrl.u32 %v1094, 7
    %v1096 = vsub.s32 6, %v1095
    %v1097 = vrot.slane %v517, %v1096
    %v1098 = vmul.f32 %v1092, %v1097
    %v1099 = vmul.f32 %v1089, %v1060
    %v1100 = vadd.f32 %v1099, %v1098
    %1101 = vset.pattern.permute.xlu0 14
    %1102 = vperm.xlu0 %1101, %v509
    %v1103 = vpop.permute.xlu0 %1102
    %v1105 = vmul.f32 %v1100, %v1103
    %v1106 = vsel %vm311, %v1105, 0.0
    %v1107 = vrot.slane %v1106, 4
    %v1108 = vadd.f32 %v1106, %v1107
    %v1109 = vrot.slane %v1108, 2
    %v1110 = vadd.f32 %v1108, %v1109
    %v1111 = vrot.slane %v1110, 1
    %v1112 = vadd.f32 %v1110, %v1111
    %vm1113 = vcmp.eq.s32.totalorder %v519, 14
    %vm1114 = vcmp.eq.s32.totalorder %v520, 14
    %v1115 = vsel %vm1113, 1, 0
    %v1116 = vsel %vm1114, 1, 0
    %v1117 = vcvt.s32.f32 %v1115
    %v1118 = vcvt.s32.f32 %v1116
    %v1119 = vmul.f32 %v1117, %v1112
    %v1120 = vmul.f32 %v1118, %v1112
    %v1121 = vadd.f32 %v1081, %v1119
    %v1122 = vadd.f32 %v1082, %v1120
    %v1123 = vlaneseq
    %v1124 = vshrl.u32 %v1123, 7
    %v1125 = vsub.s32 7, %v1124
    %v1126 = vrot.slane %v428, %v1125
    %v1127 = vmul.f32 %v1126, %v515
    %v1128 = vmul.f32 %v1127, 1.442695
    %v1129 = vpow.pop %v1128
    %1130 = vset.pattern.permute.xlu0 15
    %1131 = vperm.xlu0 %1130, %v504
    %v1132 = vpop.permute.xlu0 %1131
    %v1134 = vlaneseq
    %v1135 = vshrl.u32 %v1134, 7
    %v1136 = vsub.s32 7, %v1135
    %v1137 = vrot.slane %v517, %v1136
    %v1138 = vmul.f32 %v1132, %v1137
    %v1139 = vmul.f32 %v1129, %v1100
    %v1140 = vadd.f32 %v1139, %v1138
    %1141 = vset.pattern.permute.xlu0 15
    %1142 = vperm.xlu0 %1141, %v509
    %v1143 = vpop.permute.xlu0 %1142
    %v1145 = vmul.f32 %v1140, %v1143
    %v1146 = vsel %vm311, %v1145, 0.0
    %v1147 = vrot.slane %v1146, 4
    %v1148 = vadd.f32 %v1146, %v1147
    %v1149 = vrot.slane %v1148, 2
    %v1150 = vadd.f32 %v1148, %v1149
    %v1151 = vrot.slane %v1150, 1
    %v1152 = vadd.f32 %v1150, %v1151
    %vm1153 = vcmp.eq.s32.totalorder %v519, 15
    %vm1154 = vcmp.eq.s32.totalorder %v520, 15
    %v1155 = vsel %vm1153, 1, 0
    %v1156 = vsel %vm1154, 1, 0
    %v1157 = vcvt.s32.f32 %v1155
    %v1158 = vcvt.s32.f32 %v1156
    %v1159 = vmul.f32 %v1157, %v1152
    %v1160 = vmul.f32 %v1158, %v1152
    %v1161 = vadd.f32 %v1121, %v1159
    %v1162 = vadd.f32 %v1122, %v1160
    %v1163 = vld [vmem:[%s1 + $0x187] ss:$0 sm:$0xff]
    %v1164 = vmul.f32 %v1163, %v300
    %v1165 = vmul.f32 %v1163, %v301
    %v1166 = vadd.f32 %v1161, %v1164
    %v1167 = vadd.f32 %v1162, %v1165
    %v1168 = vxor.u32 %v109, 2147483648
    %v1169 = vxor.u32 %v110, 2147483648
    %v1170 = vmul.f32 %v1168, 1.442695
    %v1171 = vpow.pop %v1170
    %v1172 = vmul.f32 %v1169, 1.442695
    %v1173 = vpow.pop %v1172
    %v1174 = vadd.f32 %v1171, 1.0
    %v1175 = vadd.f32 %v1173, 1.0
    %v1176 = vrcp.pop %v1174
    %v1177 = vmul.f32 1.0, %v1176
    %v1178 = vrcp.pop %v1175
    %v1179 = vmul.f32 1.0, %v1178
    %v1180 = vmul.f32 %v109, %v1177
    %v1181 = vmul.f32 %v110, %v1179
    %1184 = vrot.lane.b32.xlu0 %v1180, 64
    %v1185 = vpop.permute.xlu0 %1184
    %1186 = vrot.lane.b32.xlu0 %v1181, 64
    %v1187 = vpop.permute.xlu0 %1186
    %v1190 = vmul.f32 %v1166, %v1185
    %v1191 = vmul.f32 %v1167, %v1187
    %v1192 = vld [vmem:[%s1 + $0xc0] sm:$0xff]
    %v1193 = vld [vmem:[%s1 + $0xd0] sm:$0xff]
    %v1194 = vld [vmem:[%s1 + $0xe0] sm:$0xff]
    %v1195 = vld [vmem:[%s1 + $0xf0] sm:$0xff]
    %v1196 = vld [vmem:[%s1 + $0x100] sm:$0xff]
    %v1197 = vld [vmem:[%s1 + $0x110] sm:$0xff]
    %v1198 = vld [vmem:[%s1 + $0x120] sm:$0xff]
    %v1199 = vld [vmem:[%s1 + $0x130] sm:$0xff]
    %v1200 = vld [vmem:[%s1 + $0x183] ss:$0 sm:$0xff]
    %v1202 = vsel %vm311, %v1190, 0
    %v1205 = vsel %vm311, %v1191, 0
    %1207 = vmatprep.subr.mxu0 0.0
    %1208 = vmatpush1.msra.mxu0 %v1192
    %1209 = vmatprep.subr.mxu0 0.0
    %1210 = vmatpush1.msra.mxu0 %v1193
    %1211 = vmatprep.subr.mxu0 0.0
    %1212 = vmatpush1.msra.mxu0 %v1194
    %1213 = vmatprep.subr.mxu0 0.0
    %1214 = vmatpush1.msra.mxu0 %v1195
    %1215 = vmatprep.subr.mxu0 0.0
    %1216 = vmatpush1.msra.mxu0 %v1196
    %1217 = vmatprep.subr.mxu0 0.0
    %1218 = vmatpush1.msra.mxu0 %v1197
    %1219 = vmatprep.subr.mxu0 0.0
    %1220 = vmatpush1.msra.mxu0 %v1198
    %1221 = vmatprep.subr.mxu0 0.0
    %1222 = vmatpush1.msra.mxu0 %v1199
    %1223 = vmatprep.subr.mxu0 0.0
    %1224 = vmatpush1.msra.mxu0 0.0
    %1225 = vmatprep.subr.mxu0 0.0
    %1226 = vmatpush1.msra.mxu0 0.0
    %1227 = vmatprep.subr.mxu0 0.0
    %1228 = vmatpush1.msra.mxu0 0.0
    %1229 = vmatprep.subr.mxu0 0.0
    %1230 = vmatpush1.msra.mxu0 0.0
    %1231 = vmatprep.subr.mxu0 0.0
    %1232 = vmatpush1.msra.mxu0 0.0
    %1233 = vmatprep.subr.mxu0 0.0
    %1234 = vmatpush1.msra.mxu0 0.0
    %1235 = vmatprep.subr.mxu0 0.0
    %1236 = vmatpush1.msra.mxu0 0.0
    %1237 = vmatprep.subr.mxu0 0.0
    %1238 = vmatpush1.msra.mxu0 0.0
    %1239 = vmatprep.subr.mxu0 0.0
    %1240 = vmatpush1.msra.mxu0 0.0
    %1241 = vmatprep.subr.mxu0 0.0
    %1242 = vmatpush1.msra.mxu0 0.0
    %1243 = vmatprep.subr.mxu0 0.0
    %1244 = vmatpush1.msra.mxu0 0.0
    %1245 = vmatprep.subr.mxu0 0.0
    %1246 = vmatpush1.msra.mxu0 0.0
    %1247 = vmatprep.subr.mxu0 0.0
    %1248 = vmatpush1.msra.mxu0 0.0
    %1249 = vmatprep.subr.mxu0 0.0
    %1250 = vmatpush1.msra.mxu0 0.0
    %1251 = vmatprep.subr.mxu0 0.0
    %1252 = vmatpush1.msra.mxu0 0.0
    %1253 = vmatprep.subr.mxu0 0.0
    %1254 = vmatpush1.msra.mxu0 0.0
    %1255 = vmatprep.subr.mxu0 0.0
    %1256 = vmatpush1.msra.mxu0 0.0
    %1257 = vmatprep.subr.mxu0 0.0
    %1258 = vmatpush1.msra.mxu0 0.0
    %1259 = vmatprep.subr.mxu0 0.0
    %1260 = vmatpush1.msra.mxu0 0.0
    %1261 = vmatprep.subr.mxu0 0.0
    %1262 = vmatpush1.msra.mxu0 0.0
    %1263 = vmatprep.subr.mxu0 0.0
    %1264 = vmatpush1.msra.mxu0 0.0
    %1265 = vmatprep.subr.mxu0 0.0
    %1266 = vmatpush1.msra.mxu0 0.0
    %1267 = vmatprep.subr.mxu0 0.0
    %1268 = vmatpush1.msra.mxu0 0.0
    %1269 = vmatprep.subr.mxu0 0.0
    %1270 = vmatpush1.msra.mxu0 0.0
    %1271 = vmatprep.mubr.f32.mxu0 0.0
    %1272 = vmatmul.mubr.f32.gmra.mrb[0].mxu0 %v1202
    %v1273 = vpop.f32.mrb[0].mxu0
    %v1274 = vadd.f32 %v1200, %v1273
    %v1275 = vpop.f32.mrb[0].mxu0
    %1276 = vmatprep.mubr.f32.mxu0 0.0
    %1277 = vmatmul.mubr.f32.gmra.mrb[0].mxu0 %v1205
    %v1278 = vpop.f32.mrb[0].mxu0
    %v1279 = vadd.f32 %v1200, %v1278
    %v1280 = vpop.f32.mrb[0].mxu0
    %1281 = vdwg.mxu0
    %v1282 = vadd.f32 %v229, %v1274
    %v1283 = vadd.f32 %v230, %v1279
    %1284 = vst.msk [vmem:[#allocation2] sm:$0xff] %vm24, %v1282
    %1285 = vst.msk [vmem:[#allocation2 + $0x8] sm:$0xff] %vm24, %v1283
    // Predicated region
    $region10: #{tpu_custom_call.1} parent=1 // pred_check
      _
    $region11: #{tpu_custom_call.1} parent=1 // pred_check_branch
      %1287 = sbr.rel (0) target = $region13
    $region12: #{tpu_custom_call.1} parent=1 // pred_region
      %s1289 = ssub.s32 256, 256
      %1290 = vsyncadd [#allocation3], %s1289
      %s1291 = sshll.u32 [#allocation2], 4
      %s1292 = int_to_ptr.vmem [resolvable:$true] %s1291
      %1297 = dma.vmem_to_hbm [thread:$0]  %s1292, 256, %s2, [#allocation3], 128, 128, 8
    $region13: #{tpu_custom_call.1} parent=1 // pred_fallthru
      _
    // Predicated region
    $region14: #{tpu_custom_call.1} parent=1 // pred_check
      _
    $region15: #{tpu_custom_call.1} parent=1 // pred_check_branch
      %1299 = sbr.rel (0) target = $region17
    $region16: #{tpu_custom_call.1} parent=1 // pred_region
      %1300 = dma.done [#allocation3], 256
    $region17: #{tpu_custom_call.1} parent=1 // pred_fallthru
      _
    %1301 = vsyncpa [#allocation3], 1

</llo_original>
